<compile_context>
chip_gen: v7x
topology: tpu7x:2x2x1
jax: 0.10.0
libtpu: 0.0.40
codegen_flags: <defaults>
</compile_context>

<pallas_src>
import math

import numpy as np

import jax
import jax.numpy as jnp
from jax.experimental import pallas as pl
from jax.experimental.pallas import tpu as pltpu


def _round_up(x, m):
    return ((x + m - 1) // m) * m


def _pef_kernel(pos_ref, tbl_ref, wt_ref, out_ref):
    pos = pos_ref[...]                  # (bm, 3) f32  columns: z, y, x
    tbl = tbl_ref[...]                  # (4, Kpad) f32: rows 0..2 block-diag freqs, row 3 phase

    # Angles for all three axes in one full-width tile.  Pad lanes get angle 0.
    ang = (pos[:, 0:1] * tbl[0:1, :]
           + pos[:, 1:2] * tbl[1:2, :]
           + pos[:, 2:3] * tbl[2:3, :]
           + tbl[3:4, :])               # (bm, Kpad)

    # Even feature lanes: sin(angle); odd lanes: cos(angle) via the pi/2 phase shift.
    # The dedicated bias lane evaluates to sin(pi/2) == 1.0.
    feat = jnp.sin(ang)                 # (bm, Kpad)

    # Single fused Linear projection (bias folded into the padded weight matrix).
    out_ref[...] = jnp.dot(
        feat, wt_ref[...],
        preferred_element_type=jnp.float32,
        precision=jax.lax.Precision.HIGHEST,   # match the reference Linear numerics
    ).astype(out_ref.dtype)


def positional_encoding_fourier_pallas(pos_embed, weight, bias, *,
                                       max_len=(1.0, 1.0, 1.0),
                                       temperature=10000.0,
                                       block_m=4096):
    """pos_embed: (N, 3) f32; weight: (D, 3H) f32 (torch Linear layout);
    bias: (D,) f32 -> (N, D) f32."""
    N, three = pos_embed.shape
    assert three == 3, "pos_embed must have 3 coordinate channels (z, y, x)"
    D, threeH = weight.shape
    assert threeH % 3 == 0
    H = threeH // 3
    assert H % 2 == 0, "hidden_dim must be even (sin/cos pairs)"

    scale = 2.0 * math.pi
    eps = 1e-6

    # ---- Host-side (data-independent) table construction ------------------
    j = np.arange(H, dtype=np.float32)
    dim_t = np.float32(temperature) ** (2.0 * np.floor(j / 2.0) / np.float32(H))
    axis_scale = np.array([scale / (m + eps) for m in max_len], dtype=np.float32)
    freq = axis_scale[:, None] / dim_t[None, :]                 # (3, H)

    # Lane layout: [z feats | y feats | x feats | bias lane | zero pad]
    k_pad = _round_up(3 * H + 8, 128)   # >= 3H + 1 spare lanes, MXU/lane aligned
    bias_lane = 3 * H

    freq_bd = np.zeros((3, k_pad), np.float32)                  # block-diagonal freqs
    for a in range(3):                                          # 0: z, 1: y, 2: x
        freq_bd[a, a * H:(a + 1) * H] = freq[a]

    phase = np.zeros((k_pad,), np.float32)
    phase[1:3 * H:2] = np.float32(math.pi / 2.0)                # odd lanes -> cos
    phase[bias_lane] = np.float32(math.pi / 2.0)                # constant-1 lane
    tbl = jnp.asarray(np.concatenate([freq_bd, phase[None, :]], axis=0))  # (4, Kpad)

    w = jnp.asarray(weight, jnp.float32)
    b = jnp.asarray(bias, jnp.float32)
    wt_pad = jnp.zeros((k_pad, D), jnp.float32)
    wt_pad = wt_pad.at[:3 * H, :].set(w.T)                      # real feature rows
    wt_pad = wt_pad.at[bias_lane, :].set(b)                     # fused bias row

    # ---- Tiling ------------------------------------------------------------
    # VMEM per step ~ 2*(bm*128 + bm*D)*4 B + feat scratch + resident tables
    # (~10 MiB at bm=4096, D=128) -> fits every generation with the limit below.
    bm = _round_up(min(block_m, _round_up(N, 8)), 8)
    steps = pl.cdiv(N, bm)
    if steps > 1 and steps % 2 == 1:
        # Balance across v7x's two TensorCores: prefer an even step count.
        bm = _round_up(pl.cdiv(N, steps + 1), 8)
    grid = (pl.cdiv(N, bm),)

    return pl.pallas_call(
        _pef_kernel,
        out_shape=jax.ShapeDtypeStruct((N, D), jnp.float32),
        grid_spec=pltpu.PrefetchScalarGridSpec(
            num_scalar_prefetch=0,
            grid=grid,
            in_specs=[
                pl.BlockSpec((bm, 3), lambda i: (i, 0)),        # coordinate tile
                pl.BlockSpec((4, k_pad), lambda i: (0, 0)),     # freq+phase (resident)
                pl.BlockSpec((k_pad, D), lambda i: (0, 0)),     # padded W^T + bias row
            ],
            out_specs=pl.BlockSpec((bm, D), lambda i: (i, 0)),
        ),
        compiler_params=pltpu.CompilerParams(
            dimension_semantics=("parallel",),
            vmem_limit_bytes=32 * 1024 * 1024,
        ),
    )(jnp.asarray(pos_embed, jnp.float32), tbl, wt_pad)


def positional_encoding_fourier_ref(pos_embed, weight, bias, *,
                                    max_len=(1.0, 1.0, 1.0),
                                    temperature=10000.0):
    """Pure-JAX mirror of the PyTorch module."""
    D, threeH = weight.shape
    H = threeH // 3
    scale = 2.0 * math.pi
    eps = 1e-6
    z = pos_embed[:, 0:1] / (max_len[0] + eps) * scale
    y = pos_embed[:, 1:2] / (max_len[1] + eps) * scale
    x = pos_embed[:, 2:3] / (max_len[2] + eps) * scale
    j = jnp.arange(H, dtype=jnp.float32)
    dim_t = jnp.asarray(temperature, jnp.float32) ** (2.0 * jnp.floor(j / 2.0) / H)

    def enc(v):
        p = v / dim_t                                    # (N, H)
        s = jnp.sin(p[:, 0::2])
        c = jnp.cos(p[:, 1::2])
        return jnp.stack([s, c], axis=2).reshape(v.shape[0], -1)

    pos = jnp.concatenate([enc(z), enc(y), enc(x)], axis=1)
    return jnp.dot(pos, weight.T, precision=jax.lax.Precision.HIGHEST) + bias


if __name__ == "__main__":
    key = jax.random.PRNGKey(0)
    k1, k2, k3 = jax.random.split(key, 3)

    # Small shapes: 64 points, hidden_dim=32 per axis, projection dim=128.
    N, H, D = 64, 32, 128
    pos_embed = jax.random.uniform(k1, (N, 3), dtype=jnp.float32)
    bound = 1.0 / math.sqrt(3 * H)
    weight = jax.random.uniform(k2, (D, 3 * H), dtype=jnp.float32,
                                minval=-bound, maxval=bound)
    bias = jax.random.uniform(k3, (D,), dtype=jnp.float32,
                              minval=-bound, maxval=bound)

    out = positional_encoding_fourier_pallas(pos_embed, weight, bias,
                                             max_len=(1.0, 1.0, 1.0),
                                             temperature=10000.0)
    out = jax.block_until_ready(out)

    ref = positional_encoding_fourier_ref(pos_embed, weight, bias,
                                          max_len=(1.0, 1.0, 1.0),
                                          temperature=10000.0)
    assert out.shape == (N, D), out.shape
    max_err = float(jnp.max(jnp.abs(out - ref)))
    assert jnp.allclose(out, ref, rtol=1e-4, atol=1e-4), max_err

    print("KERNEL_OK")
</pallas_src>

<mosaic_0001>
module attributes {stable_mosaic.version = 11 : i64} {
  func.func @_pef_kernel(%arg0: i32, %arg1: memref<64x3xf32, #tpu.memory_space<vmem>>, %arg2: memref<4x128xf32, #tpu.memory_space<vmem>>, %arg3: memref<128x128xf32, #tpu.memory_space<vmem>>, %arg4: memref<64x128xf32, #tpu.memory_space<vmem>>) attributes {dimension_semantics = [#tpu.dimension_semantics<parallel>], iteration_bounds = array<i64: 1>, scalar_prefetch = 0 : i64, scratch_operands = 0 : i64, tpu.core_type = #tpu.core_type<tc>, window_params = [{transform_indices = @transform_0, window_bounds = array<i64: 64, 3>}, {pipeline_mode = #tpu.pipeline_mode<synchronous>, transform_indices = @transform_1, window_bounds = array<i64: 4, 128>}, {pipeline_mode = #tpu.pipeline_mode<synchronous>, transform_indices = @transform_2, window_bounds = array<i64: 128, 128>}, {transform_indices = @transform_3, window_bounds = array<i64: 64, 128>}]} {
    %c0 = arith.constant 0 : index
    %c0_0 = arith.constant 0 : index
    %0 = vector.load %arg1[%c0, %c0_0] : memref<64x3xf32, #tpu.memory_space<vmem>>, vector<64x3xf32>
    %c0_1 = arith.constant 0 : index
    %c0_2 = arith.constant 0 : index
    %1 = vector.load %arg2[%c0_1, %c0_2] : memref<4x128xf32, #tpu.memory_space<vmem>>, vector<4x128xf32>
    %2 = vector.extract_strided_slice %0 {offsets = [0, 0], sizes = [64, 1], strides = [1, 1]} : vector<64x3xf32> to vector<64x1xf32>
    %3 = vector.extract_strided_slice %1 {offsets = [0, 0], sizes = [1, 128], strides = [1, 1]} : vector<4x128xf32> to vector<1x128xf32>
    %4 = vector.broadcast %2 : vector<64x1xf32> to vector<64x128xf32>
    %5 = vector.broadcast %3 : vector<1x128xf32> to vector<64x128xf32>
    %6 = arith.mulf %4, %5 : vector<64x128xf32>
    %7 = vector.extract_strided_slice %0 {offsets = [0, 1], sizes = [64, 1], strides = [1, 1]} : vector<64x3xf32> to vector<64x1xf32>
    %8 = vector.extract_strided_slice %1 {offsets = [1, 0], sizes = [1, 128], strides = [1, 1]} : vector<4x128xf32> to vector<1x128xf32>
    %9 = vector.broadcast %7 : vector<64x1xf32> to vector<64x128xf32>
    %10 = vector.broadcast %8 : vector<1x128xf32> to vector<64x128xf32>
    %11 = arith.mulf %9, %10 : vector<64x128xf32>
    %12 = arith.addf %6, %11 : vector<64x128xf32>
    %13 = vector.extract_strided_slice %0 {offsets = [0, 2], sizes = [64, 1], strides = [1, 1]} : vector<64x3xf32> to vector<64x1xf32>
    %14 = vector.extract_strided_slice %1 {offsets = [2, 0], sizes = [1, 128], strides = [1, 1]} : vector<4x128xf32> to vector<1x128xf32>
    %15 = vector.broadcast %13 : vector<64x1xf32> to vector<64x128xf32>
    %16 = vector.broadcast %14 : vector<1x128xf32> to vector<64x128xf32>
    %17 = arith.mulf %15, %16 : vector<64x128xf32>
    %18 = arith.addf %12, %17 : vector<64x128xf32>
    %19 = vector.extract_strided_slice %1 {offsets = [3, 0], sizes = [1, 128], strides = [1, 1]} : vector<4x128xf32> to vector<1x128xf32>
    %20 = vector.broadcast %19 : vector<1x128xf32> to vector<64x128xf32>
    %21 = arith.addf %18, %20 : vector<64x128xf32>
    %22 = math.sin %21 : vector<64x128xf32>
    %c0_3 = arith.constant 0 : index
    %c0_4 = arith.constant 0 : index
    %23 = vector.load %arg3[%c0_3, %c0_4] : memref<128x128xf32, #tpu.memory_space<vmem>>, vector<128x128xf32>
    %cst = arith.constant dense<0.000000e+00> : vector<64x128xf32>
    %24 = tpu.matmul %22, %23, %cst {dimension_numbers = #tpu.dot_dimension_numbers<[1], [0], [0], [1], [0, 0, 1, 1], [], []>, precision = #tpu.contract_precision<fp32>} : vector<64x128xf32>, vector<128x128xf32>, vector<64x128xf32> -> vector<64x128xf32>
    %c0_5 = arith.constant 0 : index
    %c0_6 = arith.constant 0 : index
    %25 = vector.load %arg4[%c0_5, %c0_6] : memref<64x128xf32, #tpu.memory_space<vmem>>, vector<64x128xf32>
    tpu.vector_store %arg4[%c0_5, %c0_6], %24 {strides = array<i32>} : memref<64x128xf32, #tpu.memory_space<vmem>>, vector<64x128xf32>,
    return
  }
  func.func @transform_0(%arg0: i32) -> (i32, i32) {
    %c0_i32 = arith.constant 0 : i32
    %c0_i32_0 = arith.constant 0 : i32
    return %arg0, %c0_i32 : i32, i32
  }
  func.func @transform_1(%arg0: i32) -> (i32, i32) {
    %c0_i32 = arith.constant 0 : i32
    %c0_i32_0 = arith.constant 0 : i32
    %c0_i32_1 = arith.constant 0 : i32
    return %c0_i32, %c0_i32_0 : i32, i32
  }
  func.func @transform_2(%arg0: i32) -> (i32, i32) {
    %c0_i32 = arith.constant 0 : i32
    %c0_i32_0 = arith.constant 0 : i32
    %c0_i32_1 = arith.constant 0 : i32
    return %c0_i32, %c0_i32_0 : i32, i32
  }
  func.func @transform_3(%arg0: i32) -> (i32, i32) {
    %c0_i32 = arith.constant 0 : i32
    %c0_i32_0 = arith.constant 0 : i32
    return %arg0, %c0_i32 : i32, i32
  }
}

</mosaic_0001>

<llo_original>
// kernel: tpu_custom_call.1
$region0: #{tpu_custom_call.1}
  #allocation0 [shape = 'u32[]', space=smem, size = 0x4, offset = 0x4, fixed_abs, tag = 'smem constant byte address 0x4 - core index']
  #allocation1 [shape = 'u32[144,128]{1,0:T(1,128)}', space=vmem, size = 0x12000, scoped, tag = 'internal scratch']
  %s0 = inlined_call_operand.vmem [shape: f32[64,3], index: 0, kind: input, shape index: {}]
  %s1 = inlined_call_operand.vmem [shape: f32[4,128], index: 1, kind: input, shape index: {}]
  %s2 = inlined_call_operand.hbm [shape: f32[128,128], index: 2, kind: input, shape index: {}]
  %s3 = inlined_call_operand.hbm [shape: f32[64,128], index: 3, kind: output, shape index: {}]
  %s4 = sld [smem:[#allocation0]]
  $region26: #{tpu_custom_call.1} parent=0
    _
  %s6 = ssub.s32 1, %s4
  %s7 = scalar_select 0, %s6, %s4
  $region1: #{tpu_custom_call.1} parent=0
    #allocation2 [shape = 'u8[65536]{0}', space=vmem, size = 0x10000, scoped, tag = 'input window, operand 2, single buffered']
    #allocation3 [shape = 's32[1]{0}', space=sflag, size = 0x4, scoped, tag = 'scoped memory for tpu_custom_call.1']
    #allocation4 [shape = 's32[1]{0}', space=sflag, size = 0x4, scoped, tag = 'scoped memory for tpu_custom_call.1']
    #allocation5 [shape = 'u8[32768]{0}', space=vmem, size = 0x8000, scoped, tag = 'output window, operand 0, single buffered']
    %8 = vsyncpa [#allocation3], 0
    %9 = vsyncpa [#allocation4], 0
    // Predicated region
    $region2: #{tpu_custom_call.1} parent=1 // pred_check
      _
    $region3: #{tpu_custom_call.1} parent=1 // pred_check_branch
      %11 = sbr.rel (0) target = $region5
    $region4: #{tpu_custom_call.1} parent=1 // pred_region
      _
    $region5: #{tpu_custom_call.1} parent=1 // pred_fallthru
      _
    // Predicated region
    $region6: #{tpu_custom_call.1} parent=1 // pred_check
      _
    $region7: #{tpu_custom_call.1} parent=1 // pred_check_branch
      %13 = sbr.rel (0) target = $region9
    $region8: #{tpu_custom_call.1} parent=1 // pred_region
      _
    $region9: #{tpu_custom_call.1} parent=1 // pred_fallthru
      _
    // Predicated region
    $region10: #{tpu_custom_call.1} parent=1 // pred_check
      _
    $region11: #{tpu_custom_call.1} parent=1 // pred_check_branch
      %15 = sbr.rel (0) target = $region13
    $region12: #{tpu_custom_call.1} parent=1 // pred_region
      %s17 = ssub.s32 2048, 2048
      %18 = vsyncadd [#allocation3], %s17
      %s19 = sshll.u32 [#allocation2], 4
      %s20 = int_to_ptr.vmem [resolvable:$true] %s19
      %25 = dma.hbm_to_vmem [thread:$0]  %s2, 2048, %s20, [#allocation3], 128, 128, 8
    $region13: #{tpu_custom_call.1} parent=1 // pred_fallthru
      _
    // Predicated region
    $region14: #{tpu_custom_call.1} parent=1 // pred_check
      _
    $region15: #{tpu_custom_call.1} parent=1 // pred_check_branch
      %27 = sbr.rel (0) target = $region17
    $region16: #{tpu_custom_call.1} parent=1 // pred_region
      %28 = dma.done [#allocation3], 2048
    $region17: #{tpu_custom_call.1} parent=1 // pred_fallthru
      _
    %v29 = vld [vmem:[%s0] sm:$0xff]
    %v30 = vld [vmem:[%s0 + $0x8] sm:$0xff]
    %v31 = vld [vmem:[%s0 + $0x10] sm:$0xff]
    %v32 = vld [vmem:[%s0 + $0x18] sm:$0xff]
    %v33 = vld [vmem:[%s0 + $0x20] sm:$0xff]
    %v34 = vld [vmem:[%s0 + $0x28] sm:$0xff]
    %v35 = vld [vmem:[%s0 + $0x30] sm:$0xff]
    %v36 = vld [vmem:[%s0 + $0x38] sm:$0xff]
    %v37 = vld [vmem:[%s1] sm:$0xf]
    %39 = vset.pattern.permute.xlu0 0
    %40 = vperm.xlu0 %39, %v29
    %v41 = vpop.permute.xlu0 %40
    %44 = vset.pattern.permute.xlu0 0
    %45 = vperm.xlu0 %44, %v30
    %v46 = vpop.permute.xlu0 %45
    %49 = vset.pattern.permute.xlu0 0
    %50 = vperm.xlu0 %49, %v31
    %v51 = vpop.permute.xlu0 %50
    %54 = vset.pattern.permute.xlu0 0
    %55 = vperm.xlu0 %54, %v32
    %v56 = vpop.permute.xlu0 %55
    %59 = vset.pattern.permute.xlu0 0
    %60 = vperm.xlu0 %59, %v33
    %v61 = vpop.permute.xlu0 %60
    %64 = vset.pattern.permute.xlu0 0
    %65 = vperm.xlu0 %64, %v34
    %v66 = vpop.permute.xlu0 %65
    %69 = vset.pattern.permute.xlu0 0
    %70 = vperm.xlu0 %69, %v35
    %v71 = vpop.permute.xlu0 %70
    %74 = vset.pattern.permute.xlu0 0
    %75 = vperm.xlu0 %74, %v36
    %v76 = vpop.permute.xlu0 %75
    %v78 = vlaneseq
    %v79 = vshrl.u32 %v78, 7
    %v80 = vsub.s32 0, %v79
    %v81 = vrot.slane %v37, %v80
    %v82 = vmul.f32 %v41, %v81
    %v83 = vmul.f32 %v46, %v81
    %v84 = vmul.f32 %v51, %v81
    %v85 = vmul.f32 %v56, %v81
    %v86 = vmul.f32 %v61, %v81
    %v87 = vmul.f32 %v66, %v81
    %v88 = vmul.f32 %v71, %v81
    %v89 = vmul.f32 %v76, %v81
    %90 = vset.pattern.permute.xlu0 1
    %91 = vperm.xlu0 %90, %v29
    %v92 = vpop.permute.xlu0 %91
    %94 = vset.pattern.permute.xlu0 1
    %95 = vperm.xlu0 %94, %v30
    %v96 = vpop.permute.xlu0 %95
    %98 = vset.pattern.permute.xlu0 1
    %99 = vperm.xlu0 %98, %v31
    %v100 = vpop.permute.xlu0 %99
    %102 = vset.pattern.permute.xlu0 1
    %103 = vperm.xlu0 %102, %v32
    %v104 = vpop.permute.xlu0 %103
    %106 = vset.pattern.permute.xlu0 1
    %107 = vperm.xlu0 %106, %v33
    %v108 = vpop.permute.xlu0 %107
    %110 = vset.pattern.permute.xlu0 1
    %111 = vperm.xlu0 %110, %v34
    %v112 = vpop.permute.xlu0 %111
    %114 = vset.pattern.permute.xlu0 1
    %115 = vperm.xlu0 %114, %v35
    %v116 = vpop.permute.xlu0 %115
    %118 = vset.pattern.permute.xlu0 1
    %119 = vperm.xlu0 %118, %v36
    %v120 = vpop.permute.xlu0 %119
    %v122 = vlaneseq
    %v123 = vshrl.u32 %v122, 7
    %v124 = vsub.s32 1, %v123
    %v125 = vrot.slane %v37, %v124
    %v126 = vmul.f32 %v92, %v125
    %v127 = vmul.f32 %v96, %v125
    %v128 = vmul.f32 %v100, %v125
    %v129 = vmul.f32 %v104, %v125
    %v130 = vmul.f32 %v108, %v125
    %v131 = vmul.f32 %v112, %v125
    %v132 = vmul.f32 %v116, %v125
    %v133 = vmul.f32 %v120, %v125
    %v134 = vadd.f32 %v82, %v126
    %v135 = vadd.f32 %v83, %v127
    %v136 = vadd.f32 %v84, %v128
    %v137 = vadd.f32 %v85, %v129
    %v138 = vadd.f32 %v86, %v130
    %v139 = vadd.f32 %v87, %v131
    %v140 = vadd.f32 %v88, %v132
    %v141 = vadd.f32 %v89, %v133
    %142 = vset.pattern.permute.xlu0 2
    %143 = vperm.xlu0 %142, %v29
    %v144 = vpop.permute.xlu0 %143
    %146 = vset.pattern.permute.xlu0 2
    %147 = vperm.xlu0 %146, %v30
    %v148 = vpop.permute.xlu0 %147
    %150 = vset.pattern.permute.xlu0 2
    %151 = vperm.xlu0 %150, %v31
    %v152 = vpop.permute.xlu0 %151
    %154 = vset.pattern.permute.xlu0 2
    %155 = vperm.xlu0 %154, %v32
    %v156 = vpop.permute.xlu0 %155
    %158 = vset.pattern.permute.xlu0 2
    %159 = vperm.xlu0 %158, %v33
    %v160 = vpop.permute.xlu0 %159
    %162 = vset.pattern.permute.xlu0 2
    %163 = vperm.xlu0 %162, %v34
    %v164 = vpop.permute.xlu0 %163
    %166 = vset.pattern.permute.xlu0 2
    %167 = vperm.xlu0 %166, %v35
    %v168 = vpop.permute.xlu0 %167
    %170 = vset.pattern.permute.xlu0 2
    %171 = vperm.xlu0 %170, %v36
    %v172 = vpop.permute.xlu0 %171
    %v174 = vlaneseq
    %v175 = vshrl.u32 %v174, 7
    %v176 = vsub.s32 2, %v175
    %v177 = vrot.slane %v37, %v176
    %v178 = vmul.f32 %v144, %v177
    %v179 = vmul.f32 %v148, %v177
    %v180 = vmul.f32 %v152, %v177
    %v181 = vmul.f32 %v156, %v177
    %v182 = vmul.f32 %v160, %v177
    %v183 = vmul.f32 %v164, %v177
    %v184 = vmul.f32 %v168, %v177
    %v185 = vmul.f32 %v172, %v177
    %v186 = vadd.f32 %v134, %v178
    %v187 = vadd.f32 %v135, %v179
    %v188 = vadd.f32 %v136, %v180
    %v189 = vadd.f32 %v137, %v181
    %v190 = vadd.f32 %v138, %v182
    %v191 = vadd.f32 %v139, %v183
    %v192 = vadd.f32 %v140, %v184
    %v193 = vadd.f32 %v141, %v185
    %v194 = vlaneseq
    %v195 = vshrl.u32 %v194, 7
    %v196 = vsub.s32 3, %v195
    %v197 = vrot.slane %v37, %v196
    %v198 = vadd.f32 %v186, %v197
    %v199 = vadd.f32 %v187, %v197
    %v200 = vadd.f32 %v188, %v197
    %v201 = vadd.f32 %v189, %v197
    %v202 = vadd.f32 %v190, %v197
    %v203 = vadd.f32 %v191, %v197
    %v204 = vadd.f32 %v192, %v197
    %v205 = vadd.f32 %v193, %v197
    %v206 = vand.u32 2147483647, %v198
    %vm207 = vcmp.le.f32.partialorder %v206, 0.7853982
    %vm208 = vcmp.lt.s32.totalorder %v198, 0
    %v209 = vand.u32 %v198, 2139095040
    %v210 = vshrl.u32 %v209, 23
    %v211 = vsub.s32 %v210, 127
    %v212 = vand.u32 2147483647, %v198
    %v213 = vand.u32 %v212, 8388607
    %v214 = vor.u32 %v213, 8388608
    %v215 = vsub.s32 0, %v214
    %v216 = vadd.s32 %v211, 1
    %vm217 = vcmp.gt.s32.totalorder %v216, 0
    %v218 = vsel %vm217, %v216, 0
    %v219 = vshrl.u32 %v218, 5
    %v220 = vand.u32 %v218, 31
    %v221 = vsub.s32 32, %v220
    %v222 = vshrl.u32 683565275, %v221
    %v223 = vshll.u32 683565275, %v220
    %v224 = vshrl.u32 2475754826, %v221
    %v225 = vor.u32 %v223, %v224
    %v226 = vshll.u32 2475754826, %v220
    %v227 = vshrl.u32 2131351028, %v221
    %v228 = vor.u32 %v226, %v227
    %v229 = vshll.u32 2131351028, %v220
    %v230 = vshrl.u32 2102212464, %v221
    %v231 = vor.u32 %v229, %v230
    %v232 = vshll.u32 2102212464, %v220
    %v233 = vshrl.u32 920167782, %v221
    %v234 = vor.u32 %v232, %v233
    %v235 = vshll.u32 920167782, %v220
    %v236 = vshrl.u32 1326507024, %v221
    %v237 = vor.u32 %v235, %v236
    %vm238 = vcmp.lt.s32.totalorder %v219, 1
    %vm239 = vcmp.lt.s32.totalorder %v219, 2
    %vm240 = vcmp.lt.s32.totalorder %v219, 3
    %vm241 = vcmp.lt.s32.totalorder %v219, 4
    %v242 = vsel %vm238, %v222, %v225
    %v243 = vsel %vm241, %v231, 2102212464
    %v244 = vsel %vm240, %v228, %v243
    %v245 = vsel %vm239, %v242, %v244
    %v246 = vsel %vm238, %v225, %v228
    %v247 = vsel %vm241, %v234, 920167782
    %v248 = vsel %vm240, %v231, %v247
    %v249 = vsel %vm239, %v246, %v248
    %v250 = vsel %vm238, %v228, %v231
    %v251 = vsel %vm241, %v237, 1326507024
    %v252 = vsel %vm240, %v234, %v251
    %v253 = vsel %vm239, %v250, %v252
    %v254 = vshll.u32 %v214, 8
    %v255 = vmul.u32.u64.compose %v254, %v253
    %v256 = vextract.low.u32 %v255
    %v257 = vextract.high.u32 %v255
    %v258 = vmul.u32.u64.compose %v254, %v249
    %v259 = vextract.low.u32 %v258
    %v260 = vextract.high.u32 %v258
    %v261 = vmul.u32 %v254, %v245
    %v262 = vadd.s32 %v257, %v259
    %vm263 = vc.u32 %v257, %v259
    %v264 = vadd.s32 %v260, 1
    %v265 = vsel %vm263, %v264, %v260
    %v266 = vadd.s32 %v261, %v265
    %v267 = vadd.s32 %v266, 536870912
    %v268 = vshrl.u32 %v267, 30
    %v269 = vshll.u32 %v268, 30
    %v270 = vsub.s32 %v266, %v269
    %vm271 = vcmp.lt.s32.totalorder %v270, 0
    %v272 = vsub.s32 0, %v270
    %v273 = vsel %vm271, %v272, %v270
    %v274 = vclz %v273
    %v275 = vsub.s32 %v274, 2
    %vm276 = vcmp.gt.s32.totalorder 0, %v275
    %v277 = vsel %vm276, 0, %v275
    %v278 = vsub.s32 32, %v277
    %v279 = vshll.u32 %v270, %v277
    %v280 = vshrl.u32 %v262, %v278
    %v281 = vor.u32 %v279, %v280
    %v282 = vsub.s32 4294967266, %v277
    %v283 = vadd.s32 %v282, 127
    %v284 = vshll.u32 %v283, 23
    %v285 = vor.u32 4788187, %v284
    %v286 = vand.u32 2147483647, %v285
    %v288 = vcvt.s32.f32 %v281
    %v289 = vmul.f32 %v288, %v286
    %v290 = vxor.u32 %v289, 2147483648
    %v291 = vsel %vm208, %v290, %v289
    %v292 = vsub.s32 4, %v268
    %v293 = vsel %vm208, %v292, %v268
    %v294 = vsel %vm207, %v198, %v291
    %v295 = vsel %vm207, 0, %v293
    %v296 = vcosq.f32.pop %v294
    %v297 = vsinq.f32.pop %v294
    %vm298 = vweird.f32 %v198
    %v299 = vadd.s32 %v295, 3
    %v300 = vand.u32 %v299, 3
    %vm301 = vcmp.lt.s32.totalorder %v300, 2
    %vm302 = vcmp.eq.s32.totalorder %v300, 0
    %v303 = vxor.u32 %v297, 2147483648
    %v304 = vsel %vm302, %v296, %v303
    %vm305 = vcmp.eq.s32.totalorder %v300, 2
    %v306 = vxor.u32 %v296, 2147483648
    %v307 = vsel %vm305, %v306, %v297
    %v308 = vsel %vm301, %v304, %v307
    %v309 = vsel %vm298, nan, %v308
    %v310 = vand.u32 2147483647, %v199
    %vm311 = vcmp.le.f32.partialorder %v310, 0.7853982
    %vm312 = vcmp.lt.s32.totalorder %v199, 0
    %v313 = vand.u32 %v199, 2139095040
    %v314 = vshrl.u32 %v313, 23
    %v315 = vsub.s32 %v314, 127
    %v316 = vand.u32 2147483647, %v199
    %v317 = vand.u32 %v316, 8388607
    %v318 = vor.u32 %v317, 8388608
    %v319 = vsub.s32 0, %v318
    %v320 = vadd.s32 %v315, 1
    %vm321 = vcmp.gt.s32.totalorder %v320, 0
    %v322 = vsel %vm321, %v320, 0
    %v323 = vshrl.u32 %v322, 5
    %v324 = vand.u32 %v322, 31
    %v325 = vsub.s32 32, %v324
    %v326 = vshrl.u32 683565275, %v325
    %v327 = vshll.u32 683565275, %v324
    %v328 = vshrl.u32 2475754826, %v325
    %v329 = vor.u32 %v327, %v328
    %v330 = vshll.u32 2475754826, %v324
    %v331 = vshrl.u32 2131351028, %v325
    %v332 = vor.u32 %v330, %v331
    %v333 = vshll.u32 2131351028, %v324
    %v334 = vshrl.u32 2102212464, %v325
    %v335 = vor.u32 %v333, %v334
    %v336 = vshll.u32 2102212464, %v324
    %v337 = vshrl.u32 920167782, %v325
    %v338 = vor.u32 %v336, %v337
    %v339 = vshll.u32 920167782, %v324
    %v340 = vshrl.u32 1326507024, %v325
    %v341 = vor.u32 %v339, %v340
    %vm342 = vcmp.lt.s32.totalorder %v323, 1
    %vm343 = vcmp.lt.s32.totalorder %v323, 2
    %vm344 = vcmp.lt.s32.totalorder %v323, 3
    %vm345 = vcmp.lt.s32.totalorder %v323, 4
    %v346 = vsel %vm342, %v326, %v329
    %v347 = vsel %vm345, %v335, 2102212464
    %v348 = vsel %vm344, %v332, %v347
    %v349 = vsel %vm343, %v346, %v348
    %v350 = vsel %vm342, %v329, %v332
    %v351 = vsel %vm345, %v338, 920167782
    %v352 = vsel %vm344, %v335, %v351
    %v353 = vsel %vm343, %v350, %v352
    %v354 = vsel %vm342, %v332, %v335
    %v355 = vsel %vm345, %v341, 1326507024
    %v356 = vsel %vm344, %v338, %v355
    %v357 = vsel %vm343, %v354, %v356
    %v358 = vshll.u32 %v318, 8
    %v359 = vmul.u32.u64.compose %v358, %v357
    %v360 = vextract.low.u32 %v359
    %v361 = vextract.high.u32 %v359
    %v362 = vmul.u32.u64.compose %v358, %v353
    %v363 = vextract.low.u32 %v362
    %v364 = vextract.high.u32 %v362
    %v365 = vmul.u32 %v358, %v349
    %v366 = vadd.s32 %v361, %v363
    %vm367 = vc.u32 %v361, %v363
    %v368 = vadd.s32 %v364, 1
    %v369 = vsel %vm367, %v368, %v364
    %v370 = vadd.s32 %v365, %v369
    %v371 = vadd.s32 %v370, 536870912
    %v372 = vshrl.u32 %v371, 30
    %v373 = vshll.u32 %v372, 30
    %v374 = vsub.s32 %v370, %v373
    %vm375 = vcmp.lt.s32.totalorder %v374, 0
    %v376 = vsub.s32 0, %v374
    %v377 = vsel %vm375, %v376, %v374
    %v378 = vclz %v377
    %v379 = vsub.s32 %v378, 2
    %vm380 = vcmp.gt.s32.totalorder 0, %v379
    %v381 = vsel %vm380, 0, %v379
    %v382 = vsub.s32 32, %v381
    %v383 = vshll.u32 %v374, %v381
    %v384 = vshrl.u32 %v366, %v382
    %v385 = vor.u32 %v383, %v384
    %v386 = vsub.s32 4294967266, %v381
    %v387 = vadd.s32 %v386, 127
    %v388 = vshll.u32 %v387, 23
    %v389 = vor.u32 4788187, %v388
    %v390 = vand.u32 2147483647, %v389
    %v392 = vcvt.s32.f32 %v385
    %v393 = vmul.f32 %v392, %v390
    %v394 = vxor.u32 %v393, 2147483648
    %v395 = vsel %vm312, %v394, %v393
    %v396 = vsub.s32 4, %v372
    %v397 = vsel %vm312, %v396, %v372
    %v398 = vsel %vm311, %v199, %v395
    %v399 = vsel %vm311, 0, %v397
    %v400 = vcosq.f32.pop %v398
    %v401 = vsinq.f32.pop %v398
    %vm402 = vweird.f32 %v199
    %v403 = vadd.s32 %v399, 3
    %v404 = vand.u32 %v403, 3
    %vm405 = vcmp.lt.s32.totalorder %v404, 2
    %vm406 = vcmp.eq.s32.totalorder %v404, 0
    %v407 = vxor.u32 %v401, 2147483648
    %v408 = vsel %vm406, %v400, %v407
    %vm409 = vcmp.eq.s32.totalorder %v404, 2
    %v410 = vxor.u32 %v400, 2147483648
    %v411 = vsel %vm409, %v410, %v401
    %v412 = vsel %vm405, %v408, %v411
    %v413 = vsel %vm402, nan, %v412
    %v414 = vand.u32 2147483647, %v200
    %vm415 = vcmp.le.f32.partialorder %v414, 0.7853982
    %vm416 = vcmp.lt.s32.totalorder %v200, 0
    %v417 = vand.u32 %v200, 2139095040
    %v418 = vshrl.u32 %v417, 23
    %v419 = vsub.s32 %v418, 127
    %v420 = vand.u32 2147483647, %v200
    %v421 = vand.u32 %v420, 8388607
    %v422 = vor.u32 %v421, 8388608
    %v423 = vsub.s32 0, %v422
    %v424 = vadd.s32 %v419, 1
    %vm425 = vcmp.gt.s32.totalorder %v424, 0
    %v426 = vsel %vm425, %v424, 0
    %v427 = vshrl.u32 %v426, 5
    %v428 = vand.u32 %v426, 31
    %v429 = vsub.s32 32, %v428
    %v430 = vshrl.u32 683565275, %v429
    %v431 = vshll.u32 683565275, %v428
    %v432 = vshrl.u32 2475754826, %v429
    %v433 = vor.u32 %v431, %v432
    %v434 = vshll.u32 2475754826, %v428
    %v435 = vshrl.u32 2131351028, %v429
    %v436 = vor.u32 %v434, %v435
    %v437 = vshll.u32 2131351028, %v428
    %v438 = vshrl.u32 2102212464, %v429
    %v439 = vor.u32 %v437, %v438
    %v440 = vshll.u32 2102212464, %v428
    %v441 = vshrl.u32 920167782, %v429
    %v442 = vor.u32 %v440, %v441
    %v443 = vshll.u32 920167782, %v428
    %v444 = vshrl.u32 1326507024, %v429
    %v445 = vor.u32 %v443, %v444
    %vm446 = vcmp.lt.s32.totalorder %v427, 1
    %vm447 = vcmp.lt.s32.totalorder %v427, 2
    %vm448 = vcmp.lt.s32.totalorder %v427, 3
    %vm449 = vcmp.lt.s32.totalorder %v427, 4
    %v450 = vsel %vm446, %v430, %v433
    %v451 = vsel %vm449, %v439, 2102212464
    %v452 = vsel %vm448, %v436, %v451
    %v453 = vsel %vm447, %v450, %v452
    %v454 = vsel %vm446, %v433, %v436
    %v455 = vsel %vm449, %v442, 920167782
    %v456 = vsel %vm448, %v439, %v455
    %v457 = vsel %vm447, %v454, %v456
    %v458 = vsel %vm446, %v436, %v439
    %v459 = vsel %vm449, %v445, 1326507024
    %v460 = vsel %vm448, %v442, %v459
    %v461 = vsel %vm447, %v458, %v460
    %v462 = vshll.u32 %v422, 8
    %v463 = vmul.u32.u64.compose %v462, %v461
    %v464 = vextract.low.u32 %v463
    %v465 = vextract.high.u32 %v463
    %v466 = vmul.u32.u64.compose %v462, %v457
    %v467 = vextract.low.u32 %v466
    %v468 = vextract.high.u32 %v466
    %v469 = vmul.u32 %v462, %v453
    %v470 = vadd.s32 %v465, %v467
    %vm471 = vc.u32 %v465, %v467
    %v472 = vadd.s32 %v468, 1
    %v473 = vsel %vm471, %v472, %v468
    %v474 = vadd.s32 %v469, %v473
    %v475 = vadd.s32 %v474, 536870912
    %v476 = vshrl.u32 %v475, 30
    %v477 = vshll.u32 %v476, 30
    %v478 = vsub.s32 %v474, %v477
    %vm479 = vcmp.lt.s32.totalorder %v478, 0
    %v480 = vsub.s32 0, %v478
    %v481 = vsel %vm479, %v480, %v478
    %v482 = vclz %v481
    %v483 = vsub.s32 %v482, 2
    %vm484 = vcmp.gt.s32.totalorder 0, %v483
    %v485 = vsel %vm484, 0, %v483
    %v486 = vsub.s32 32, %v485
    %v487 = vshll.u32 %v478, %v485
    %v488 = vshrl.u32 %v470, %v486
    %v489 = vor.u32 %v487, %v488
    %v490 = vsub.s32 4294967266, %v485
    %v491 = vadd.s32 %v490, 127
    %v492 = vshll.u32 %v491, 23
    %v493 = vor.u32 4788187, %v492
    %v494 = vand.u32 2147483647, %v493
    %v496 = vcvt.s32.f32 %v489
    %v497 = vmul.f32 %v496, %v494
    %v498 = vxor.u32 %v497, 2147483648
    %v499 = vsel %vm416, %v498, %v497
    %v500 = vsub.s32 4, %v476
    %v501 = vsel %vm416, %v500, %v476
    %v502 = vsel %vm415, %v200, %v499
    %v503 = vsel %vm415, 0, %v501
    %v504 = vcosq.f32.pop %v502
    %v505 = vsinq.f32.pop %v502
    %vm506 = vweird.f32 %v200
    %v507 = vadd.s32 %v503, 3
    %v508 = vand.u32 %v507, 3
    %vm509 = vcmp.lt.s32.totalorder %v508, 2
    %vm510 = vcmp.eq.s32.totalorder %v508, 0
    %v511 = vxor.u32 %v505, 2147483648
    %v512 = vsel %vm510, %v504, %v511
    %vm513 = vcmp.eq.s32.totalorder %v508, 2
    %v514 = vxor.u32 %v504, 2147483648
    %v515 = vsel %vm513, %v514, %v505
    %v516 = vsel %vm509, %v512, %v515
    %v517 = vsel %vm506, nan, %v516
    %v518 = vand.u32 2147483647, %v201
    %vm519 = vcmp.le.f32.partialorder %v518, 0.7853982
    %vm520 = vcmp.lt.s32.totalorder %v201, 0
    %v521 = vand.u32 %v201, 2139095040
    %v522 = vshrl.u32 %v521, 23
    %v523 = vsub.s32 %v522, 127
    %v524 = vand.u32 2147483647, %v201
    %v525 = vand.u32 %v524, 8388607
    %v526 = vor.u32 %v525, 8388608
    %v527 = vsub.s32 0, %v526
    %v528 = vadd.s32 %v523, 1
    %vm529 = vcmp.gt.s32.totalorder %v528, 0
    %v530 = vsel %vm529, %v528, 0
    %v531 = vshrl.u32 %v530, 5
    %v532 = vand.u32 %v530, 31
    %v533 = vsub.s32 32, %v532
    %v534 = vshrl.u32 683565275, %v533
    %v535 = vshll.u32 683565275, %v532
    %v536 = vshrl.u32 2475754826, %v533
    %v537 = vor.u32 %v535, %v536
    %v538 = vshll.u32 2475754826, %v532
    %v539 = vshrl.u32 2131351028, %v533
    %v540 = vor.u32 %v538, %v539
    %v541 = vshll.u32 2131351028, %v532
    %v542 = vshrl.u32 2102212464, %v533
    %v543 = vor.u32 %v541, %v542
    %v544 = vshll.u32 2102212464, %v532
    %v545 = vshrl.u32 920167782, %v533
    %v546 = vor.u32 %v544, %v545
    %v547 = vshll.u32 920167782, %v532
    %v548 = vshrl.u32 1326507024, %v533
    %v549 = vor.u32 %v547, %v548
    %vm550 = vcmp.lt.s32.totalorder %v531, 1
    %vm551 = vcmp.lt.s32.totalorder %v531, 2
    %vm552 = vcmp.lt.s32.totalorder %v531, 3
    %vm553 = vcmp.lt.s32.totalorder %v531, 4
    %v554 = vsel %vm550, %v534, %v537
    %v555 = vsel %vm553, %v543, 2102212464
    %v556 = vsel %vm552, %v540, %v555
    %v557 = vsel %vm551, %v554, %v556
    %v558 = vsel %vm550, %v537, %v540
    %v559 = vsel %vm553, %v546, 920167782
    %v560 = vsel %vm552, %v543, %v559
    %v561 = vsel %vm551, %v558, %v560
    %v562 = vsel %vm550, %v540, %v543
    %v563 = vsel %vm553, %v549, 1326507024
    %v564 = vsel %vm552, %v546, %v563
    %v565 = vsel %vm551, %v562, %v564
    %v566 = vshll.u32 %v526, 8
    %v567 = vmul.u32.u64.compose %v566, %v565
    %v568 = vextract.low.u32 %v567
    %v569 = vextract.high.u32 %v567
    %v570 = vmul.u32.u64.compose %v566, %v561
    %v571 = vextract.low.u32 %v570
    %v572 = vextract.high.u32 %v570
    %v573 = vmul.u32 %v566, %v557
    %v574 = vadd.s32 %v569, %v571
    %vm575 = vc.u32 %v569, %v571
    %v576 = vadd.s32 %v572, 1
    %v577 = vsel %vm575, %v576, %v572
    %v578 = vadd.s32 %v573, %v577
    %v579 = vadd.s32 %v578, 536870912
    %v580 = vshrl.u32 %v579, 30
    %v581 = vshll.u32 %v580, 30
    %v582 = vsub.s32 %v578, %v581
    %vm583 = vcmp.lt.s32.totalorder %v582, 0
    %v584 = vsub.s32 0, %v582
    %v585 = vsel %vm583, %v584, %v582
    %v586 = vclz %v585
    %v587 = vsub.s32 %v586, 2
    %vm588 = vcmp.gt.s32.totalorder 0, %v587
    %v589 = vsel %vm588, 0, %v587
    %v590 = vsub.s32 32, %v589
    %v591 = vshll.u32 %v582, %v589
    %v592 = vshrl.u32 %v574, %v590
    %v593 = vor.u32 %v591, %v592
    %v594 = vsub.s32 4294967266, %v589
    %v595 = vadd.s32 %v594, 127
    %v596 = vshll.u32 %v595, 23
    %v597 = vor.u32 4788187, %v596
    %v598 = vand.u32 2147483647, %v597
    %v600 = vcvt.s32.f32 %v593
    %v601 = vmul.f32 %v600, %v598
    %v602 = vxor.u32 %v601, 2147483648
    %v603 = vsel %vm520, %v602, %v601
    %v604 = vsub.s32 4, %v580
    %v605 = vsel %vm520, %v604, %v580
    %v606 = vsel %vm519, %v201, %v603
    %v607 = vsel %vm519, 0, %v605
    %v608 = vcosq.f32.pop %v606
    %v609 = vsinq.f32.pop %v606
    %vm610 = vweird.f32 %v201
    %v611 = vadd.s32 %v607, 3
    %v612 = vand.u32 %v611, 3
    %vm613 = vcmp.lt.s32.totalorder %v612, 2
    %vm614 = vcmp.eq.s32.totalorder %v612, 0
    %v615 = vxor.u32 %v609, 2147483648
    %v616 = vsel %vm614, %v608, %v615
    %vm617 = vcmp.eq.s32.totalorder %v612, 2
    %v618 = vxor.u32 %v608, 2147483648
    %v619 = vsel %vm617, %v618, %v609
    %v620 = vsel %vm613, %v616, %v619
    %v621 = vsel %vm610, nan, %v620
    %v622 = vand.u32 2147483647, %v202
    %vm623 = vcmp.le.f32.partialorder %v622, 0.7853982
    %vm624 = vcmp.lt.s32.totalorder %v202, 0
    %v625 = vand.u32 %v202, 2139095040
    %v626 = vshrl.u32 %v625, 23
    %v627 = vsub.s32 %v626, 127
    %v628 = vand.u32 2147483647, %v202
    %v629 = vand.u32 %v628, 8388607
    %v630 = vor.u32 %v629, 8388608
    %v631 = vsub.s32 0, %v630
    %v632 = vadd.s32 %v627, 1
    %vm633 = vcmp.gt.s32.totalorder %v632, 0
    %v634 = vsel %vm633, %v632, 0
    %v635 = vshrl.u32 %v634, 5
    %v636 = vand.u32 %v634, 31
    %v637 = vsub.s32 32, %v636
    %v638 = vshrl.u32 683565275, %v637
    %v639 = vshll.u32 683565275, %v636
    %v640 = vshrl.u32 2475754826, %v637
    %v641 = vor.u32 %v639, %v640
    %v642 = vshll.u32 2475754826, %v636
    %v643 = vshrl.u32 2131351028, %v637
    %v644 = vor.u32 %v642, %v643
    %v645 = vshll.u32 2131351028, %v636
    %v646 = vshrl.u32 2102212464, %v637
    %v647 = vor.u32 %v645, %v646
    %v648 = vshll.u32 2102212464, %v636
    %v649 = vshrl.u32 920167782, %v637
    %v650 = vor.u32 %v648, %v649
    %v651 = vshll.u32 920167782, %v636
    %v652 = vshrl.u32 1326507024, %v637
    %v653 = vor.u32 %v651, %v652
    %vm654 = vcmp.lt.s32.totalorder %v635, 1
    %vm655 = vcmp.lt.s32.totalorder %v635, 2
    %vm656 = vcmp.lt.s32.totalorder %v635, 3
    %vm657 = vcmp.lt.s32.totalorder %v635, 4
    %v658 = vsel %vm654, %v638, %v641
    %v659 = vsel %vm657, %v647, 2102212464
    %v660 = vsel %vm656, %v644, %v659
    %v661 = vsel %vm655, %v658, %v660
    %v662 = vsel %vm654, %v641, %v644
    %v663 = vsel %vm657, %v650, 920167782
    %v664 = vsel %vm656, %v647, %v663
    %v665 = vsel %vm655, %v662, %v664
    %v666 = vsel %vm654, %v644, %v647
    %v667 = vsel %vm657, %v653, 1326507024
    %v668 = vsel %vm656, %v650, %v667
    %v669 = vsel %vm655, %v666, %v668
    %v670 = vshll.u32 %v630, 8
    %v671 = vmul.u32.u64.compose %v670, %v669
    %v672 = vextract.low.u32 %v671
    %v673 = vextract.high.u32 %v671
    %v674 = vmul.u32.u64.compose %v670, %v665
    %v675 = vextract.low.u32 %v674
    %v676 = vextract.high.u32 %v674
    %v677 = vmul.u32 %v670, %v661
    %v678 = vadd.s32 %v673, %v675
    %vm679 = vc.u32 %v673, %v675
    %v680 = vadd.s32 %v676, 1
    %v681 = vsel %vm679, %v680, %v676
    %v682 = vadd.s32 %v677, %v681
    %v683 = vadd.s32 %v682, 536870912
    %v684 = vshrl.u32 %v683, 30
    %v685 = vshll.u32 %v684, 30
    %v686 = vsub.s32 %v682, %v685
    %vm687 = vcmp.lt.s32.totalorder %v686, 0
    %v688 = vsub.s32 0, %v686
    %v689 = vsel %vm687, %v688, %v686
    %v690 = vclz %v689
    %v691 = vsub.s32 %v690, 2
    %vm692 = vcmp.gt.s32.totalorder 0, %v691
    %v693 = vsel %vm692, 0, %v691
    %v694 = vsub.s32 32, %v693
    %v695 = vshll.u32 %v686, %v693
    %v696 = vshrl.u32 %v678, %v694
    %v697 = vor.u32 %v695, %v696
    %v698 = vsub.s32 4294967266, %v693
    %v699 = vadd.s32 %v698, 127
    %v700 = vshll.u32 %v699, 23
    %v701 = vor.u32 4788187, %v700
    %v702 = vand.u32 2147483647, %v701
    %v704 = vcvt.s32.f32 %v697
    %v705 = vmul.f32 %v704, %v702
    %v706 = vxor.u32 %v705, 2147483648
    %v707 = vsel %vm624, %v706, %v705
    %v708 = vsub.s32 4, %v684
    %v709 = vsel %vm624, %v708, %v684
    %v710 = vsel %vm623, %v202, %v707
    %v711 = vsel %vm623, 0, %v709
    %v712 = vcosq.f32.pop %v710
    %v713 = vsinq.f32.pop %v710
    %vm714 = vweird.f32 %v202
    %v715 = vadd.s32 %v711, 3
    %v716 = vand.u32 %v715, 3
    %vm717 = vcmp.lt.s32.totalorder %v716, 2
    %vm718 = vcmp.eq.s32.totalorder %v716, 0
    %v719 = vxor.u32 %v713, 2147483648
    %v720 = vsel %vm718, %v712, %v719
    %vm721 = vcmp.eq.s32.totalorder %v716, 2
    %v722 = vxor.u32 %v712, 2147483648
    %v723 = vsel %vm721, %v722, %v713
    %v724 = vsel %vm717, %v720, %v723
    %v725 = vsel %vm714, nan, %v724
    %v726 = vand.u32 2147483647, %v203
    %vm727 = vcmp.le.f32.partialorder %v726, 0.7853982
    %vm728 = vcmp.lt.s32.totalorder %v203, 0
    %v729 = vand.u32 %v203, 2139095040
    %v730 = vshrl.u32 %v729, 23
    %v731 = vsub.s32 %v730, 127
    %v732 = vand.u32 2147483647, %v203
    %v733 = vand.u32 %v732, 8388607
    %v734 = vor.u32 %v733, 8388608
    %v735 = vsub.s32 0, %v734
    %v736 = vadd.s32 %v731, 1
    %vm737 = vcmp.gt.s32.totalorder %v736, 0
    %v738 = vsel %vm737, %v736, 0
    %v739 = vshrl.u32 %v738, 5
    %v740 = vand.u32 %v738, 31
    %v741 = vsub.s32 32, %v740
    %v742 = vshrl.u32 683565275, %v741
    %v743 = vshll.u32 683565275, %v740
    %v744 = vshrl.u32 2475754826, %v741
    %v745 = vor.u32 %v743, %v744
    %v746 = vshll.u32 2475754826, %v740
    %v747 = vshrl.u32 2131351028, %v741
    %v748 = vor.u32 %v746, %v747
    %v749 = vshll.u32 2131351028, %v740
    %v750 = vshrl.u32 2102212464, %v741
    %v751 = vor.u32 %v749, %v750
    %v752 = vshll.u32 2102212464, %v740
    %v753 = vshrl.u32 920167782, %v741
    %v754 = vor.u32 %v752, %v753
    %v755 = vshll.u32 920167782, %v740
    %v756 = vshrl.u32 1326507024, %v741
    %v757 = vor.u32 %v755, %v756
    %vm758 = vcmp.lt.s32.totalorder %v739, 1
    %vm759 = vcmp.lt.s32.totalorder %v739, 2
    %vm760 = vcmp.lt.s32.totalorder %v739, 3
    %vm761 = vcmp.lt.s32.totalorder %v739, 4
    %v762 = vsel %vm758, %v742, %v745
    %v763 = vsel %vm761, %v751, 2102212464
    %v764 = vsel %vm760, %v748, %v763
    %v765 = vsel %vm759, %v762, %v764
    %v766 = vsel %vm758, %v745, %v748
    %v767 = vsel %vm761, %v754, 920167782
    %v768 = vsel %vm760, %v751, %v767
    %v769 = vsel %vm759, %v766, %v768
    %v770 = vsel %vm758, %v748, %v751
    %v771 = vsel %vm761, %v757, 1326507024
    %v772 = vsel %vm760, %v754, %v771
    %v773 = vsel %vm759, %v770, %v772
    %v774 = vshll.u32 %v734, 8
    %v775 = vmul.u32.u64.compose %v774, %v773
    %v776 = vextract.low.u32 %v775
    %v777 = vextract.high.u32 %v775
    %v778 = vmul.u32.u64.compose %v774, %v769
    %v779 = vextract.low.u32 %v778
    %v780 = vextract.high.u32 %v778
    %v781 = vmul.u32 %v774, %v765
    %v782 = vadd.s32 %v777, %v779
    %vm783 = vc.u32 %v777, %v779
    %v784 = vadd.s32 %v780, 1
    %v785 = vsel %vm783, %v784, %v780
    %v786 = vadd.s32 %v781, %v785
    %v787 = vadd.s32 %v786, 536870912
    %v788 = vshrl.u32 %v787, 30
    %v789 = vshll.u32 %v788, 30
    %v790 = vsub.s32 %v786, %v789
    %vm791 = vcmp.lt.s32.totalorder %v790, 0
    %v792 = vsub.s32 0, %v790
    %v793 = vsel %vm791, %v792, %v790
    %v794 = vclz %v793
    %v795 = vsub.s32 %v794, 2
    %vm796 = vcmp.gt.s32.totalorder 0, %v795
    %v797 = vsel %vm796, 0, %v795
    %v798 = vsub.s32 32, %v797
    %v799 = vshll.u32 %v790, %v797
    %v800 = vshrl.u32 %v782, %v798
    %v801 = vor.u32 %v799, %v800
    %v802 = vsub.s32 4294967266, %v797
    %v803 = vadd.s32 %v802, 127
    %v804 = vshll.u32 %v803, 23
    %v805 = vor.u32 4788187, %v804
    %v806 = vand.u32 2147483647, %v805
    %v808 = vcvt.s32.f32 %v801
    %v809 = vmul.f32 %v808, %v806
    %v810 = vxor.u32 %v809, 2147483648
    %v811 = vsel %vm728, %v810, %v809
    %v812 = vsub.s32 4, %v788
    %v813 = vsel %vm728, %v812, %v788
    %v814 = vsel %vm727, %v203, %v811
    %v815 = vsel %vm727, 0, %v813
    %v816 = vcosq.f32.pop %v814
    %v817 = vsinq.f32.pop %v814
    %vm818 = vweird.f32 %v203
    %v819 = vadd.s32 %v815, 3
    %v820 = vand.u32 %v819, 3
    %vm821 = vcmp.lt.s32.totalorder %v820, 2
    %vm822 = vcmp.eq.s32.totalorder %v820, 0
    %v823 = vxor.u32 %v817, 2147483648
    %v824 = vsel %vm822, %v816, %v823
    %vm825 = vcmp.eq.s32.totalorder %v820, 2
    %v826 = vxor.u32 %v816, 2147483648
    %v827 = vsel %vm825, %v826, %v817
    %v828 = vsel %vm821, %v824, %v827
    %v829 = vsel %vm818, nan, %v828
    %v830 = vand.u32 2147483647, %v204
    %vm831 = vcmp.le.f32.partialorder %v830, 0.7853982
    %vm832 = vcmp.lt.s32.totalorder %v204, 0
    %v833 = vand.u32 %v204, 2139095040
    %v834 = vshrl.u32 %v833, 23
    %v835 = vsub.s32 %v834, 127
    %v836 = vand.u32 2147483647, %v204
    %v837 = vand.u32 %v836, 8388607
    %v838 = vor.u32 %v837, 8388608
    %v839 = vsub.s32 0, %v838
    %v840 = vadd.s32 %v835, 1
    %vm841 = vcmp.gt.s32.totalorder %v840, 0
    %v842 = vsel %vm841, %v840, 0
    %v843 = vshrl.u32 %v842, 5
    %v844 = vand.u32 %v842, 31
    %v845 = vsub.s32 32, %v844
    %v846 = vshrl.u32 683565275, %v845
    %v847 = vshll.u32 683565275, %v844
    %v848 = vshrl.u32 2475754826, %v845
    %v849 = vor.u32 %v847, %v848
    %v850 = vshll.u32 2475754826, %v844
    %v851 = vshrl.u32 2131351028, %v845
    %v852 = vor.u32 %v850, %v851
    %v853 = vshll.u32 2131351028, %v844
    %v854 = vshrl.u32 2102212464, %v845
    %v855 = vor.u32 %v853, %v854
    %v856 = vshll.u32 2102212464, %v844
    %v857 = vshrl.u32 920167782, %v845
    %v858 = vor.u32 %v856, %v857
    %v859 = vshll.u32 920167782, %v844
    %v860 = vshrl.u32 1326507024, %v845
    %v861 = vor.u32 %v859, %v860
    %vm862 = vcmp.lt.s32.totalorder %v843, 1
    %vm863 = vcmp.lt.s32.totalorder %v843, 2
    %vm864 = vcmp.lt.s32.totalorder %v843, 3
    %vm865 = vcmp.lt.s32.totalorder %v843, 4
    %v866 = vsel %vm862, %v846, %v849
    %v867 = vsel %vm865, %v855, 2102212464
    %v868 = vsel %vm864, %v852, %v867
    %v869 = vsel %vm863, %v866, %v868
    %v870 = vsel %vm862, %v849, %v852
    %v871 = vsel %vm865, %v858, 920167782
    %v872 = vsel %vm864, %v855, %v871
    %v873 = vsel %vm863, %v870, %v872
    %v874 = vsel %vm862, %v852, %v855
    %v875 = vsel %vm865, %v861, 1326507024
    %v876 = vsel %vm864, %v858, %v875
    %v877 = vsel %vm863, %v874, %v876
    %v878 = vshll.u32 %v838, 8
    %v879 = vmul.u32.u64.compose %v878, %v877
    %v880 = vextract.low.u32 %v879
    %v881 = vextract.high.u32 %v879
    %v882 = vmul.u32.u64.compose %v878, %v873
    %v883 = vextract.low.u32 %v882
    %v884 = vextract.high.u32 %v882
    %v885 = vmul.u32 %v878, %v869
    %v886 = vadd.s32 %v881, %v883
    %vm887 = vc.u32 %v881, %v883
    %v888 = vadd.s32 %v884, 1
    %v889 = vsel %vm887, %v888, %v884
    %v890 = vadd.s32 %v885, %v889
    %v891 = vadd.s32 %v890, 536870912
    %v892 = vshrl.u32 %v891, 30
    %v893 = vshll.u32 %v892, 30
    %v894 = vsub.s32 %v890, %v893
    %vm895 = vcmp.lt.s32.totalorder %v894, 0
    %v896 = vsub.s32 0, %v894
    %v897 = vsel %vm895, %v896, %v894
    %v898 = vclz %v897
    %v899 = vsub.s32 %v898, 2
    %vm900 = vcmp.gt.s32.totalorder 0, %v899
    %v901 = vsel %vm900, 0, %v899
    %v902 = vsub.s32 32, %v901
    %v903 = vshll.u32 %v894, %v901
    %v904 = vshrl.u32 %v886, %v902
    %v905 = vor.u32 %v903, %v904
    %v906 = vsub.s32 4294967266, %v901
    %v907 = vadd.s32 %v906, 127
    %v908 = vshll.u32 %v907, 23
    %v909 = vor.u32 4788187, %v908
    %v910 = vand.u32 2147483647, %v909
    %v912 = vcvt.s32.f32 %v905
    %v913 = vmul.f32 %v912, %v910
    %v914 = vxor.u32 %v913, 2147483648
    %v915 = vsel %vm832, %v914, %v913
    %v916 = vsub.s32 4, %v892
    %v917 = vsel %vm832, %v916, %v892
    %v918 = vsel %vm831, %v204, %v915
    %v919 = vsel %vm831, 0, %v917
    %v920 = vcosq.f32.pop %v918
    %v921 = vsinq.f32.pop %v918
    %vm922 = vweird.f32 %v204
    %v923 = vadd.s32 %v919, 3
    %v924 = vand.u32 %v923, 3
    %vm925 = vcmp.lt.s32.totalorder %v924, 2
    %vm926 = vcmp.eq.s32.totalorder %v924, 0
    %v927 = vxor.u32 %v921, 2147483648
    %v928 = vsel %vm926, %v920, %v927
    %vm929 = vcmp.eq.s32.totalorder %v924, 2
    %v930 = vxor.u32 %v920, 2147483648
    %v931 = vsel %vm929, %v930, %v921
    %v932 = vsel %vm925, %v928, %v931
    %v933 = vsel %vm922, nan, %v932
    %v934 = vand.u32 2147483647, %v205
    %vm935 = vcmp.le.f32.partialorder %v934, 0.7853982
    %vm936 = vcmp.lt.s32.totalorder %v205, 0
    %v937 = vand.u32 %v205, 2139095040
    %v938 = vshrl.u32 %v937, 23
    %v939 = vsub.s32 %v938, 127
    %v940 = vand.u32 2147483647, %v205
    %v941 = vand.u32 %v940, 8388607
    %v942 = vor.u32 %v941, 8388608
    %v943 = vsub.s32 0, %v942
    %v944 = vadd.s32 %v939, 1
    %vm945 = vcmp.gt.s32.totalorder %v944, 0
    %v946 = vsel %vm945, %v944, 0
    %v947 = vshrl.u32 %v946, 5
    %v948 = vand.u32 %v946, 31
    %v949 = vsub.s32 32, %v948
    %v950 = vshrl.u32 683565275, %v949
    %v951 = vshll.u32 683565275, %v948
    %v952 = vshrl.u32 2475754826, %v949
    %v953 = vor.u32 %v951, %v952
    %v954 = vshll.u32 2475754826, %v948
    %v955 = vshrl.u32 2131351028, %v949
    %v956 = vor.u32 %v954, %v955
    %v957 = vshll.u32 2131351028, %v948
    %v958 = vshrl.u32 2102212464, %v949
    %v959 = vor.u32 %v957, %v958
    %v960 = vshll.u32 2102212464, %v948
    %v961 = vshrl.u32 920167782, %v949
    %v962 = vor.u32 %v960, %v961
    %v963 = vshll.u32 920167782, %v948
    %v964 = vshrl.u32 1326507024, %v949
    %v965 = vor.u32 %v963, %v964
    %vm966 = vcmp.lt.s32.totalorder %v947, 1
    %vm967 = vcmp.lt.s32.totalorder %v947, 2
    %vm968 = vcmp.lt.s32.totalorder %v947, 3
    %vm969 = vcmp.lt.s32.totalorder %v947, 4
    %v970 = vsel %vm966, %v950, %v953
    %v971 = vsel %vm969, %v959, 2102212464
    %v972 = vsel %vm968, %v956, %v971
    %v973 = vsel %vm967, %v970, %v972
    %v974 = vsel %vm966, %v953, %v956
    %v975 = vsel %vm969, %v962, 920167782
    %v976 = vsel %vm968, %v959, %v975
    %v977 = vsel %vm967, %v974, %v976
    %v978 = vsel %vm966, %v956, %v959
    %v979 = vsel %vm969, %v965, 1326507024
    %v980 = vsel %vm968, %v962, %v979
    %v981 = vsel %vm967, %v978, %v980
    %v982 = vshll.u32 %v942, 8
    %v983 = vmul.u32.u64.compose %v982, %v981
    %v984 = vextract.low.u32 %v983
    %v985 = vextract.high.u32 %v983
    %v986 = vmul.u32.u64.compose %v982, %v977
    %v987 = vextract.low.u32 %v986
    %v988 = vextract.high.u32 %v986
    %v989 = vmul.u32 %v982, %v973
    %v990 = vadd.s32 %v985, %v987
    %vm991 = vc.u32 %v985, %v987
    %v992 = vadd.s32 %v988, 1
    %v993 = vsel %vm991, %v992, %v988
    %v994 = vadd.s32 %v989, %v993
    %v995 = vadd.s32 %v994, 536870912
    %v996 = vshrl.u32 %v995, 30
    %v997 = vshll.u32 %v996, 30
    %v998 = vsub.s32 %v994, %v997
    %vm999 = vcmp.lt.s32.totalorder %v998, 0
    %v1000 = vsub.s32 0, %v998
    %v1001 = vsel %vm999, %v1000, %v998
    %v1002 = vclz %v1001
    %v1003 = vsub.s32 %v1002, 2
    %vm1004 = vcmp.gt.s32.totalorder 0, %v1003
    %v1005 = vsel %vm1004, 0, %v1003
    %v1006 = vsub.s32 32, %v1005
    %v1007 = vshll.u32 %v998, %v1005
    %v1008 = vshrl.u32 %v990, %v1006
    %v1009 = vor.u32 %v1007, %v1008
    %v1010 = vsub.s32 4294967266, %v1005
    %v1011 = vadd.s32 %v1010, 127
    %v1012 = vshll.u32 %v1011, 23
    %v1013 = vor.u32 4788187, %v1012
    %v1014 = vand.u32 2147483647, %v1013
    %v1016 = vcvt.s32.f32 %v1009
    %v1017 = vmul.f32 %v1016, %v1014
    %v1018 = vxor.u32 %v1017, 2147483648
    %v1019 = vsel %vm936, %v1018, %v1017
    %v1020 = vsub.s32 4, %v996
    %v1021 = vsel %vm936, %v1020, %v996
    %v1022 = vsel %vm935, %v205, %v1019
    %v1023 = vsel %vm935, 0, %v1021
    %v1024 = vcosq.f32.pop %v1022
    %v1025 = vsinq.f32.pop %v1022
    %vm1026 = vweird.f32 %v205
    %v1027 = vadd.s32 %v1023, 3
    %v1028 = vand.u32 %v1027, 3
    %vm1029 = vcmp.lt.s32.totalorder %v1028, 2
    %vm1030 = vcmp.eq.s32.totalorder %v1028, 0
    %v1031 = vxor.u32 %v1025, 2147483648
    %v1032 = vsel %vm1030, %v1024, %v1031
    %vm1033 = vcmp.eq.s32.totalorder %v1028, 2
    %v1034 = vxor.u32 %v1024, 2147483648
    %v1035 = vsel %vm1033, %v1034, %v1025
    %v1036 = vsel %vm1029, %v1032, %v1035
    %v1037 = vsel %vm1026, nan, %v1036
    %v1038 = vld [vmem:[#allocation2] sm:$0xff]
    %v1039 = vld [vmem:[#allocation2 + $0x8] sm:$0xff]
    %v1040 = vld [vmem:[#allocation2 + $0x10] sm:$0xff]
    %v1041 = vld [vmem:[#allocation2 + $0x18] sm:$0xff]
    %v1042 = vld [vmem:[#allocation2 + $0x20] sm:$0xff]
    %v1043 = vld [vmem:[#allocation2 + $0x28] sm:$0xff]
    %v1044 = vld [vmem:[#allocation2 + $0x30] sm:$0xff]
    %v1045 = vld [vmem:[#allocation2 + $0x38] sm:$0xff]
    %v1046 = vld [vmem:[#allocation2 + $0x40] sm:$0xff]
    %v1047 = vld [vmem:[#allocation2 + $0x48] sm:$0xff]
    %v1048 = vld [vmem:[#allocation2 + $0x50] sm:$0xff]
    %v1049 = vld [vmem:[#allocation2 + $0x58] sm:$0xff]
    %v1050 = vld [vmem:[#allocation2 + $0x60] sm:$0xff]
    %v1051 = vld [vmem:[#allocation2 + $0x68] sm:$0xff]
    %v1052 = vld [vmem:[#allocation2 + $0x70] sm:$0xff]
    %v1053 = vld [vmem:[#allocation2 + $0x78] sm:$0xff]
    %1054 = vmatprep.subr.mxu0 0.0
    %v1055 = vand.u32 %v1038, 4294901760
    %1056 = vmatpush1.msra.mxu0 %v1055
    %1057 = vmatprep.subr.mxu0 0.0
    %v1058 = vand.u32 %v1039, 4294901760
    %1059 = vmatpush1.msra.mxu0 %v1058
    %1060 = vmatprep.subr.mxu0 0.0
    %v1061 = vand.u32 %v1040, 4294901760
    %1062 = vmatpush1.msra.mxu0 %v1061
    %1063 = vmatprep.subr.mxu0 0.0
    %v1064 = vand.u32 %v1041, 4294901760
    %1065 = vmatpush1.msra.mxu0 %v1064
    %1066 = vmatprep.subr.mxu0 0.0
    %v1067 = vand.u32 %v1042, 4294901760
    %1068 = vmatpush1.msra.mxu0 %v1067
    %1069 = vmatprep.subr.mxu0 0.0
    %v1070 = vand.u32 %v1043, 4294901760
    %1071 = vmatpush1.msra.mxu0 %v1070
    %1072 = vmatprep.subr.mxu0 0.0
    %v1073 = vand.u32 %v1044, 4294901760
    %1074 = vmatpush1.msra.mxu0 %v1073
    %1075 = vmatprep.subr.mxu0 0.0
    %v1076 = vand.u32 %v1045, 4294901760
    %1077 = vmatpush1.msra.mxu0 %v1076
    %1078 = vmatprep.subr.mxu0 0.0
    %v1079 = vand.u32 %v1046, 4294901760
    %1080 = vmatpush1.msra.mxu0 %v1079
    %1081 = vmatprep.subr.mxu0 0.0
    %v1082 = vand.u32 %v1047, 4294901760
    %1083 = vmatpush1.msra.mxu0 %v1082
    %1084 = vmatprep.subr.mxu0 0.0
    %v1085 = vand.u32 %v1048, 4294901760
    %1086 = vmatpush1.msra.mxu0 %v1085
    %1087 = vmatprep.subr.mxu0 0.0
    %v1088 = vand.u32 %v1049, 4294901760
    %1089 = vmatpush1.msra.mxu0 %v1088
    %1090 = vmatprep.subr.mxu0 0.0
    %v1091 = vand.u32 %v1050, 4294901760
    %1092 = vmatpush1.msra.mxu0 %v1091
    %1093 = vmatprep.subr.mxu0 0.0
    %v1094 = vand.u32 %v1051, 4294901760
    %1095 = vmatpush1.msra.mxu0 %v1094
    %1096 = vmatprep.subr.mxu0 0.0
    %v1097 = vand.u32 %v1052, 4294901760
    %1098 = vmatpush1.msra.mxu0 %v1097
    %1099 = vmatprep.subr.mxu0 0.0
    %v1100 = vand.u32 %v1053, 4294901760
    %1101 = vmatpush1.msra.mxu0 %v1100
    %1102 = vmatprep.subr.mxu0 0.0
    %1103 = vmatpush1.msra.mxu0 0.0
    %1104 = vmatprep.subr.mxu0 0.0
    %1105 = vmatpush1.msra.mxu0 0.0
    %1106 = vmatprep.subr.mxu0 0.0
    %1107 = vmatpush1.msra.mxu0 0.0
    %1108 = vmatprep.subr.mxu0 0.0
    %1109 = vmatpush1.msra.mxu0 0.0
    %1110 = vmatprep.subr.mxu0 0.0
    %1111 = vmatpush1.msra.mxu0 0.0
    %1112 = vmatprep.subr.mxu0 0.0
    %1113 = vmatpush1.msra.mxu0 0.0
    %1114 = vmatprep.subr.mxu0 0.0
    %1115 = vmatpush1.msra.mxu0 0.0
    %1116 = vmatprep.subr.mxu0 0.0
    %1117 = vmatpush1.msra.mxu0 0.0
    %1118 = vmatprep.subr.mxu0 0.0
    %1119 = vmatpush1.msra.mxu0 0.0
    %1120 = vmatprep.subr.mxu0 0.0
    %1121 = vmatpush1.msra.mxu0 0.0
    %1122 = vmatprep.subr.mxu0 0.0
    %1123 = vmatpush1.msra.mxu0 0.0
    %1124 = vmatprep.subr.mxu0 0.0
    %1125 = vmatpush1.msra.mxu0 0.0
    %1126 = vmatprep.subr.mxu0 0.0
    %1127 = vmatpush1.msra.mxu0 0.0
    %1128 = vmatprep.subr.mxu0 0.0
    %1129 = vmatpush1.msra.mxu0 0.0
    %1130 = vmatprep.subr.mxu0 0.0
    %1131 = vmatpush1.msra.mxu0 0.0
    %1132 = vmatprep.subr.mxu0 0.0
    %1133 = vmatpush1.msra.mxu0 0.0
    %1134 = vmatprep.mubr.f32.mxu0 0.0
    %v1135 = vand.u32 %v309, 4294901760
    %v1136 = vsub.f32 %v309, %v1135
    %v1137 = vand.u32 %v1136, 4294901760
    %v1138 = vsub.f32 %v1136, %v1137
    %v1139 = vand.u32 %v1138, 4294901760
    %1140 = vmatmul.mubr.f32.gmra.mrb[0].mxu0 %v1139
    %v1141 = vpop.f32.mrb[0].mxu0
    %v1142 = vadd.f32 0.0, %v1141
    %v1143 = vpop.f32.mrb[0].mxu0
    %1144 = vmatprep.mubr.f32.mxu0 0.0
    %v1145 = vand.u32 %v413, 4294901760
    %v1146 = vsub.f32 %v413, %v1145
    %v1147 = vand.u32 %v1146, 4294901760
    %v1148 = vsub.f32 %v1146, %v1147
    %v1149 = vand.u32 %v1148, 4294901760
    %1150 = vmatmul.mubr.f32.gmra.mrb[0].mxu0 %v1149
    %v1151 = vpop.f32.mrb[0].mxu0
    %v1152 = vadd.f32 0.0, %v1151
    %v1153 = vpop.f32.mrb[0].mxu0
    %1154 = vmatprep.mubr.f32.mxu0 0.0
    %v1155 = vand.u32 %v517, 4294901760
    %v1156 = vsub.f32 %v517, %v1155
    %v1157 = vand.u32 %v1156, 4294901760
    %v1158 = vsub.f32 %v1156, %v1157
    %v1159 = vand.u32 %v1158, 4294901760
    %1160 = vmatmul.mubr.f32.gmra.mrb[0].mxu0 %v1159
    %v1161 = vpop.f32.mrb[0].mxu0
    %v1162 = vadd.f32 0.0, %v1161
    %v1163 = vpop.f32.mrb[0].mxu0
    %1164 = vmatprep.mubr.f32.mxu0 0.0
    %v1165 = vand.u32 %v621, 4294901760
    %v1166 = vsub.f32 %v621, %v1165
    %v1167 = vand.u32 %v1166, 4294901760
    %v1168 = vsub.f32 %v1166, %v1167
    %v1169 = vand.u32 %v1168, 4294901760
    %1170 = vmatmul.mubr.f32.gmra.mrb[0].mxu0 %v1169
    %v1171 = vpop.f32.mrb[0].mxu0
    %v1172 = vadd.f32 0.0, %v1171
    %v1173 = vpop.f32.mrb[0].mxu0
    %1174 = vmatprep.mubr.f32.mxu0 0.0
    %v1175 = vand.u32 %v725, 4294901760
    %v1176 = vsub.f32 %v725, %v1175
    %v1177 = vand.u32 %v1176, 4294901760
    %v1178 = vsub.f32 %v1176, %v1177
    %v1179 = vand.u32 %v1178, 4294901760
    %1180 = vmatmul.mubr.f32.gmra.mrb[0].mxu0 %v1179
    %v1181 = vpop.f32.mrb[0].mxu0
    %v1182 = vadd.f32 0.0, %v1181
    %v1183 = vpop.f32.mrb[0].mxu0
    %1184 = vmatprep.mubr.f32.mxu0 0.0
    %v1185 = vand.u32 %v829, 4294901760
    %v1186 = vsub.f32 %v829, %v1185
    %v1187 = vand.u32 %v1186, 4294901760
    %v1188 = vsub.f32 %v1186, %v1187
    %v1189 = vand.u32 %v1188, 4294901760
    %1190 = vmatmul.mubr.f32.gmra.mrb[0].mxu0 %v1189
    %v1191 = vpop.f32.mrb[0].mxu0
    %v1192 = vadd.f32 0.0, %v1191
    %v1193 = vpop.f32.mrb[0].mxu0
    %1194 = vmatprep.mubr.f32.mxu0 0.0
    %v1195 = vand.u32 %v933, 4294901760
    %v1196 = vsub.f32 %v933, %v1195
    %v1197 = vand.u32 %v1196, 4294901760
    %v1198 = vsub.f32 %v1196, %v1197
    %v1199 = vand.u32 %v1198, 4294901760
    %1200 = vmatmul.mubr.f32.gmra.mrb[0].mxu0 %v1199
    %v1201 = vpop.f32.mrb[0].mxu0
    %v1202 = vadd.f32 0.0, %v1201
    %v1203 = vpop.f32.mrb[0].mxu0
    %1204 = vmatprep.mubr.f32.mxu0 0.0
    %v1205 = vand.u32 %v1037, 4294901760
    %v1206 = vsub.f32 %v1037, %v1205
    %v1207 = vand.u32 %v1206, 4294901760
    %v1208 = vsub.f32 %v1206, %v1207
    %v1209 = vand.u32 %v1208, 4294901760
    %1210 = vmatmul.mubr.f32.gmra.mrb[0].mxu0 %v1209
    %v1211 = vpop.f32.mrb[0].mxu0
    %v1212 = vadd.f32 0.0, %v1211
    %v1213 = vpop.f32.mrb[0].mxu0
    %1214 = vdwg.mxu0
    %1215 = vmatprep.subr.mxu0 0.0
    %v1216 = vand.u32 %v1038, 4294901760
    %v1217 = vsub.f32 %v1038, %v1216
    %v1218 = vand.u32 %v1217, 4294901760
    %v1219 = vsub.f32 %v1217, %v1218
    %v1220 = vand.u32 %v1219, 4294901760
    %1221 = vmatpush1.msra.mxu0 %v1220
    %1222 = vmatprep.subr.mxu0 0.0
    %v1223 = vand.u32 %v1039, 4294901760
    %v1224 = vsub.f32 %v1039, %v1223
    %v1225 = vand.u32 %v1224, 4294901760
    %v1226 = vsub.f32 %v1224, %v1225
    %v1227 = vand.u32 %v1226, 4294901760
    %1228 = vmatpush1.msra.mxu0 %v1227
    %1229 = vmatprep.subr.mxu0 0.0
    %v1230 = vand.u32 %v1040, 4294901760
    %v1231 = vsub.f32 %v1040, %v1230
    %v1232 = vand.u32 %v1231, 4294901760
    %v1233 = vsub.f32 %v1231, %v1232
    %v1234 = vand.u32 %v1233, 4294901760
    %1235 = vmatpush1.msra.mxu0 %v1234
    %1236 = vmatprep.subr.mxu0 0.0
    %v1237 = vand.u32 %v1041, 4294901760
    %v1238 = vsub.f32 %v1041, %v1237
    %v1239 = vand.u32 %v1238, 4294901760
    %v1240 = vsub.f32 %v1238, %v1239
    %v1241 = vand.u32 %v1240, 4294901760
    %1242 = vmatpush1.msra.mxu0 %v1241
    %1243 = vmatprep.subr.mxu0 0.0
    %v1244 = vand.u32 %v1042, 4294901760
    %v1245 = vsub.f32 %v1042, %v1244
    %v1246 = vand.u32 %v1245, 4294901760
    %v1247 = vsub.f32 %v1245, %v1246
    %v1248 = vand.u32 %v1247, 4294901760
    %1249 = vmatpush1.msra.mxu0 %v1248
    %1250 = vmatprep.subr.mxu0 0.0
    %v1251 = vand.u32 %v1043, 4294901760
    %v1252 = vsub.f32 %v1043, %v1251
    %v1253 = vand.u32 %v1252, 4294901760
    %v1254 = vsub.f32 %v1252, %v1253
    %v1255 = vand.u32 %v1254, 4294901760
    %1256 = vmatpush1.msra.mxu0 %v1255
    %1257 = vmatprep.subr.mxu0 0.0
    %v1258 = vand.u32 %v1044, 4294901760
    %v1259 = vsub.f32 %v1044, %v1258
    %v1260 = vand.u32 %v1259, 4294901760
    %v1261 = vsub.f32 %v1259, %v1260
    %v1262 = vand.u32 %v1261, 4294901760
    %1263 = vmatpush1.msra.mxu0 %v1262
    %1264 = vmatprep.subr.mxu0 0.0
    %v1265 = vand.u32 %v1045, 4294901760
    %v1266 = vsub.f32 %v1045, %v1265
    %v1267 = vand.u32 %v1266, 4294901760
    %v1268 = vsub.f32 %v1266, %v1267
    %v1269 = vand.u32 %v1268, 4294901760
    %1270 = vmatpush1.msra.mxu0 %v1269
    %1271 = vmatprep.subr.mxu0 0.0
    %v1272 = vand.u32 %v1046, 4294901760
    %v1273 = vsub.f32 %v1046, %v1272
    %v1274 = vand.u32 %v1273, 4294901760
    %v1275 = vsub.f32 %v1273, %v1274
    %v1276 = vand.u32 %v1275, 4294901760
    %1277 = vmatpush1.msra.mxu0 %v1276
    %1278 = vmatprep.subr.mxu0 0.0
    %v1279 = vand.u32 %v1047, 4294901760
    %v1280 = vsub.f32 %v1047, %v1279
    %v1281 = vand.u32 %v1280, 4294901760
    %v1282 = vsub.f32 %v1280, %v1281
    %v1283 = vand.u32 %v1282, 4294901760
    %1284 = vmatpush1.msra.mxu0 %v1283
    %1285 = vmatprep.subr.mxu0 0.0
    %v1286 = vand.u32 %v1048, 4294901760
    %v1287 = vsub.f32 %v1048, %v1286
    %v1288 = vand.u32 %v1287, 4294901760
    %v1289 = vsub.f32 %v1287, %v1288
    %v1290 = vand.u32 %v1289, 4294901760
    %1291 = vmatpush1.msra.mxu0 %v1290
    %1292 = vmatprep.subr.mxu0 0.0
    %v1293 = vand.u32 %v1049, 4294901760
    %v1294 = vsub.f32 %v1049, %v1293
    %v1295 = vand.u32 %v1294, 4294901760
    %v1296 = vsub.f32 %v1294, %v1295
    %v1297 = vand.u32 %v1296, 4294901760
    %1298 = vmatpush1.msra.mxu0 %v1297
    %1299 = vmatprep.subr.mxu0 0.0
    %v1300 = vand.u32 %v1050, 4294901760
    %v1301 = vsub.f32 %v1050, %v1300
    %v1302 = vand.u32 %v1301, 4294901760
    %v1303 = vsub.f32 %v1301, %v1302
    %v1304 = vand.u32 %v1303, 4294901760
    %1305 = vmatpush1.msra.mxu0 %v1304
    %1306 = vmatprep.subr.mxu0 0.0
    %v1307 = vand.u32 %v1051, 4294901760
    %v1308 = vsub.f32 %v1051, %v1307
    %v1309 = vand.u32 %v1308, 4294901760
    %v1310 = vsub.f32 %v1308, %v1309
    %v1311 = vand.u32 %v1310, 4294901760
    %1312 = vmatpush1.msra.mxu0 %v1311
    %1313 = vmatprep.subr.mxu0 0.0
    %v1314 = vand.u32 %v1052, 4294901760
    %v1315 = vsub.f32 %v1052, %v1314
    %v1316 = vand.u32 %v1315, 4294901760
    %v1317 = vsub.f32 %v1315, %v1316
    %v1318 = vand.u32 %v1317, 4294901760
    %1319 = vmatpush1.msra.mxu0 %v1318
    %1320 = vmatprep.subr.mxu0 0.0
    %v1321 = vand.u32 %v1053, 4294901760
    %v1322 = vsub.f32 %v1053, %v1321
    %v1323 = vand.u32 %v1322, 4294901760
    %v1324 = vsub.f32 %v1322, %v1323
    %v1325 = vand.u32 %v1324, 4294901760
    %1326 = vmatpush1.msra.mxu0 %v1325
    %1327 = vmatprep.subr.mxu0 0.0
    %1328 = vmatpush1.msra.mxu0 0.0
    %1329 = vmatprep.subr.mxu0 0.0
    %1330 = vmatpush1.msra.mxu0 0.0
    %1331 = vmatprep.subr.mxu0 0.0
    %1332 = vmatpush1.msra.mxu0 0.0
    %1333 = vmatprep.subr.mxu0 0.0
    %1334 = vmatpush1.msra.mxu0 0.0
    %1335 = vmatprep.subr.mxu0 0.0
    %1336 = vmatpush1.msra.mxu0 0.0
    %1337 = vmatprep.subr.mxu0 0.0
    %1338 = vmatpush1.msra.mxu0 0.0
    %1339 = vmatprep.subr.mxu0 0.0
    %1340 = vmatpush1.msra.mxu0 0.0
    %1341 = vmatprep.subr.mxu0 0.0
    %1342 = vmatpush1.msra.mxu0 0.0
    %1343 = vmatprep.subr.mxu0 0.0
    %1344 = vmatpush1.msra.mxu0 0.0
    %1345 = vmatprep.subr.mxu0 0.0
    %1346 = vmatpush1.msra.mxu0 0.0
    %1347 = vmatprep.subr.mxu0 0.0
    %1348 = vmatpush1.msra.mxu0 0.0
    %1349 = vmatprep.subr.mxu0 0.0
    %1350 = vmatpush1.msra.mxu0 0.0
    %1351 = vmatprep.subr.mxu0 0.0
    %1352 = vmatpush1.msra.mxu0 0.0
    %1353 = vmatprep.subr.mxu0 0.0
    %1354 = vmatpush1.msra.mxu0 0.0
    %1355 = vmatprep.subr.mxu0 0.0
    %1356 = vmatpush1.msra.mxu0 0.0
    %1357 = vmatprep.subr.mxu0 0.0
    %1358 = vmatpush1.msra.mxu0 0.0
    %1359 = vmatprep.mubr.f32.mxu0 0.0
    %v1360 = vand.u32 %v309, 4294901760
    %1361 = vmatmul.mubr.f32.gmra.mrb[0].mxu0 %v1360
    %v1362 = vpop.f32.mrb[0].mxu0
    %v1363 = vadd.f32 %v1142, %v1362
    %v1364 = vpop.f32.mrb[0].mxu0
    %1365 = vmatprep.mubr.f32.mxu0 0.0
    %v1366 = vand.u32 %v413, 4294901760
    %1367 = vmatmul.mubr.f32.gmra.mrb[0].mxu0 %v1366
    %v1368 = vpop.f32.mrb[0].mxu0
    %v1369 = vadd.f32 %v1152, %v1368
    %v1370 = vpop.f32.mrb[0].mxu0
    %1371 = vmatprep.mubr.f32.mxu0 0.0
    %v1372 = vand.u32 %v517, 4294901760
    %1373 = vmatmul.mubr.f32.gmra.mrb[0].mxu0 %v1372
    %v1374 = vpop.f32.mrb[0].mxu0
    %v1375 = vadd.f32 %v1162, %v1374
    %v1376 = vpop.f32.mrb[0].mxu0
    %1377 = vmatprep.mubr.f32.mxu0 0.0
    %v1378 = vand.u32 %v621, 4294901760
    %1379 = vmatmul.mubr.f32.gmra.mrb[0].mxu0 %v1378
    %v1380 = vpop.f32.mrb[0].mxu0
    %v1381 = vadd.f32 %v1172, %v1380
    %v1382 = vpop.f32.mrb[0].mxu0
    %1383 = vmatprep.mubr.f32.mxu0 0.0
    %v1384 = vand.u32 %v725, 4294901760
    %1385 = vmatmul.mubr.f32.gmra.mrb[0].mxu0 %v1384
    %v1386 = vpop.f32.mrb[0].mxu0
    %v1387 = vadd.f32 %v1182, %v1386
    %v1388 = vpop.f32.mrb[0].mxu0
    %1389 = vmatprep.mubr.f32.mxu0 0.0
    %v1390 = vand.u32 %v829, 4294901760
    %1391 = vmatmul.mubr.f32.gmra.mrb[0].mxu0 %v1390
    %v1392 = vpop.f32.mrb[0].mxu0
    %v1393 = vadd.f32 %v1192, %v1392
    %v1394 = vpop.f32.mrb[0].mxu0
    %1395 = vmatprep.mubr.f32.mxu0 0.0
    %v1396 = vand.u32 %v933, 4294901760
    %1397 = vmatmul.mubr.f32.gmra.mrb[0].mxu0 %v1396
    %v1398 = vpop.f32.mrb[0].mxu0
    %v1399 = vadd.f32 %v1202, %v1398
    %v1400 = vpop.f32.mrb[0].mxu0
    %1401 = vmatprep.mubr.f32.mxu0 0.0
    %v1402 = vand.u32 %v1037, 4294901760
    %1403 = vmatmul.mubr.f32.gmra.mrb[0].mxu0 %v1402
    %v1404 = vpop.f32.mrb[0].mxu0
    %v1405 = vadd.f32 %v1212, %v1404
    %v1406 = vpop.f32.mrb[0].mxu0
    %1407 = vdwg.mxu0
    %1408 = vmatprep.subr.mxu0 0.0
    %v1409 = vand.u32 %v1038, 4294901760
    %v1410 = vsub.f32 %v1038, %v1409
    %1411 = vmatpush1.msra.mxu0 %v1410
    %1412 = vmatprep.subr.mxu0 0.0
    %v1413 = vand.u32 %v1039, 4294901760
    %v1414 = vsub.f32 %v1039, %v1413
    %1415 = vmatpush1.msra.mxu0 %v1414
    %1416 = vmatprep.subr.mxu0 0.0
    %v1417 = vand.u32 %v1040, 4294901760
    %v1418 = vsub.f32 %v1040, %v1417
    %1419 = vmatpush1.msra.mxu0 %v1418
    %1420 = vmatprep.subr.mxu0 0.0
    %v1421 = vand.u32 %v1041, 4294901760
    %v1422 = vsub.f32 %v1041, %v1421
    %1423 = vmatpush1.msra.mxu0 %v1422
    %1424 = vmatprep.subr.mxu0 0.0
    %v1425 = vand.u32 %v1042, 4294901760
    %v1426 = vsub.f32 %v1042, %v1425
    %1427 = vmatpush1.msra.mxu0 %v1426
    %1428 = vmatprep.subr.mxu0 0.0
    %v1429 = vand.u32 %v1043, 4294901760
    %v1430 = vsub.f32 %v1043, %v1429
    %1431 = vmatpush1.msra.mxu0 %v1430
    %1432 = vmatprep.subr.mxu0 0.0
    %v1433 = vand.u32 %v1044, 4294901760
    %v1434 = vsub.f32 %v1044, %v1433
    %1435 = vmatpush1.msra.mxu0 %v1434
    %1436 = vmatprep.subr.mxu0 0.0
    %v1437 = vand.u32 %v1045, 4294901760
    %v1438 = vsub.f32 %v1045, %v1437
    %1439 = vmatpush1.msra.mxu0 %v1438
    %1440 = vmatprep.subr.mxu0 0.0
    %v1441 = vand.u32 %v1046, 4294901760
    %v1442 = vsub.f32 %v1046, %v1441
    %1443 = vmatpush1.msra.mxu0 %v1442
    %1444 = vmatprep.subr.mxu0 0.0
    %v1445 = vand.u32 %v1047, 4294901760
    %v1446 = vsub.f32 %v1047, %v1445
    %1447 = vmatpush1.msra.mxu0 %v1446
    %1448 = vmatprep.subr.mxu0 0.0
    %v1449 = vand.u32 %v1048, 4294901760
    %v1450 = vsub.f32 %v1048, %v1449
    %1451 = vmatpush1.msra.mxu0 %v1450
    %1452 = vmatprep.subr.mxu0 0.0
    %v1453 = vand.u32 %v1049, 4294901760
    %v1454 = vsub.f32 %v1049, %v1453
    %1455 = vmatpush1.msra.mxu0 %v1454
    %1456 = vmatprep.subr.mxu0 0.0
    %v1457 = vand.u32 %v1050, 4294901760
    %v1458 = vsub.f32 %v1050, %v1457
    %1459 = vmatpush1.msra.mxu0 %v1458
    %1460 = vmatprep.subr.mxu0 0.0
    %v1461 = vand.u32 %v1051, 4294901760
    %v1462 = vsub.f32 %v1051, %v1461
    %1463 = vmatpush1.msra.mxu0 %v1462
    %1464 = vmatprep.subr.mxu0 0.0
    %v1465 = vand.u32 %v1052, 4294901760
    %v1466 = vsub.f32 %v1052, %v1465
    %1467 = vmatpush1.msra.mxu0 %v1466
    %1468 = vmatprep.subr.mxu0 0.0
    %v1469 = vand.u32 %v1053, 4294901760
    %v1470 = vsub.f32 %v1053, %v1469
    %1471 = vmatpush1.msra.mxu0 %v1470
    %1472 = vmatprep.subr.mxu0 0.0
    %1473 = vmatpush1.msra.mxu0 0.0
    %1474 = vmatprep.subr.mxu0 0.0
    %1475 = vmatpush1.msra.mxu0 0.0
    %1476 = vmatprep.subr.mxu0 0.0
    %1477 = vmatpush1.msra.mxu0 0.0
    %1478 = vmatprep.subr.mxu0 0.0
    %1479 = vmatpush1.msra.mxu0 0.0
    %1480 = vmatprep.subr.mxu0 0.0
    %1481 = vmatpush1.msra.mxu0 0.0
    %1482 = vmatprep.subr.mxu0 0.0
    %1483 = vmatpush1.msra.mxu0 0.0
    %1484 = vmatprep.subr.mxu0 0.0
    %1485 = vmatpush1.msra.mxu0 0.0
    %1486 = vmatprep.subr.mxu0 0.0
    %1487 = vmatpush1.msra.mxu0 0.0
    %1488 = vmatprep.subr.mxu0 0.0
    %1489 = vmatpush1.msra.mxu0 0.0
    %1490 = vmatprep.subr.mxu0 0.0
    %1491 = vmatpush1.msra.mxu0 0.0
    %1492 = vmatprep.subr.mxu0 0.0
    %1493 = vmatpush1.msra.mxu0 0.0
    %1494 = vmatprep.subr.mxu0 0.0
    %1495 = vmatpush1.msra.mxu0 0.0
    %1496 = vmatprep.subr.mxu0 0.0
    %1497 = vmatpush1.msra.mxu0 0.0
    %1498 = vmatprep.subr.mxu0 0.0
    %1499 = vmatpush1.msra.mxu0 0.0
    %1500 = vmatprep.subr.mxu0 0.0
    %1501 = vmatpush1.msra.mxu0 0.0
    %1502 = vmatprep.subr.mxu0 0.0
    %1503 = vmatpush1.msra.mxu0 0.0
    %1504 = vmatprep.mubr.f32.mxu0 0.0
    %v1505 = vand.u32 %v309, 4294901760
    %v1506 = vsub.f32 %v309, %v1505
    %1507 = vmatmul.mubr.f32.gmra.mrb[0].mxu0 %v1506
    %v1508 = vpop.f32.mrb[0].mxu0
    %v1509 = vadd.f32 %v1363, %v1508
    %v1510 = vpop.f32.mrb[0].mxu0
    %1511 = vmatprep.mubr.f32.mxu0 0.0
    %v1512 = vand.u32 %v413, 4294901760
    %v1513 = vsub.f32 %v413, %v1512
    %1514 = vmatmul.mubr.f32.gmra.mrb[0].mxu0 %v1513
    %v1515 = vpop.f32.mrb[0].mxu0
    %v1516 = vadd.f32 %v1369, %v1515
    %v1517 = vpop.f32.mrb[0].mxu0
    %1518 = vmatprep.mubr.f32.mxu0 0.0
    %v1519 = vand.u32 %v517, 4294901760
    %v1520 = vsub.f32 %v517, %v1519
    %1521 = vmatmul.mubr.f32.gmra.mrb[0].mxu0 %v1520
    %v1522 = vpop.f32.mrb[0].mxu0
    %v1523 = vadd.f32 %v1375, %v1522
    %v1524 = vpop.f32.mrb[0].mxu0
    %1525 = vmatprep.mubr.f32.mxu0 0.0
    %v1526 = vand.u32 %v621, 4294901760
    %v1527 = vsub.f32 %v621, %v1526
    %1528 = vmatmul.mubr.f32.gmra.mrb[0].mxu0 %v1527
    %v1529 = vpop.f32.mrb[0].mxu0
    %v1530 = vadd.f32 %v1381, %v1529
    %v1531 = vpop.f32.mrb[0].mxu0
    %1532 = vmatprep.mubr.f32.mxu0 0.0
    %v1533 = vand.u32 %v725, 4294901760
    %v1534 = vsub.f32 %v725, %v1533
    %1535 = vmatmul.mubr.f32.gmra.mrb[0].mxu0 %v1534
    %v1536 = vpop.f32.mrb[0].mxu0
    %v1537 = vadd.f32 %v1387, %v1536
    %v1538 = vpop.f32.mrb[0].mxu0
    %1539 = vmatprep.mubr.f32.mxu0 0.0
    %v1540 = vand.u32 %v829, 4294901760
    %v1541 = vsub.f32 %v829, %v1540
    %1542 = vmatmul.mubr.f32.gmra.mrb[0].mxu0 %v1541
    %v1543 = vpop.f32.mrb[0].mxu0
    %v1544 = vadd.f32 %v1393, %v1543
    %v1545 = vpop.f32.mrb[0].mxu0
    %1546 = vmatprep.mubr.f32.mxu0 0.0
    %v1547 = vand.u32 %v933, 4294901760
    %v1548 = vsub.f32 %v933, %v1547
    %1549 = vmatmul.mubr.f32.gmra.mrb[0].mxu0 %v1548
    %v1550 = vpop.f32.mrb[0].mxu0
    %v1551 = vadd.f32 %v1399, %v1550
    %v1552 = vpop.f32.mrb[0].mxu0
    %1553 = vmatprep.mubr.f32.mxu0 0.0
    %v1554 = vand.u32 %v1037, 4294901760
    %v1555 = vsub.f32 %v1037, %v1554
    %1556 = vmatmul.mubr.f32.gmra.mrb[0].mxu0 %v1555
    %v1557 = vpop.f32.mrb[0].mxu0
    %v1558 = vadd.f32 %v1405, %v1557
    %v1559 = vpop.f32.mrb[0].mxu0
    %1560 = vdwg.mxu0
    %1561 = vmatprep.subr.mxu0 0.0
    %v1562 = vand.u32 %v1038, 4294901760
    %1563 = vmatpush1.msra.mxu0 %v1562
    %1564 = vmatprep.subr.mxu0 0.0
    %v1565 = vand.u32 %v1039, 4294901760
    %1566 = vmatpush1.msra.mxu0 %v1565
    %1567 = vmatprep.subr.mxu0 0.0
    %v1568 = vand.u32 %v1040, 4294901760
    %1569 = vmatpush1.msra.mxu0 %v1568
    %1570 = vmatprep.subr.mxu0 0.0
    %v1571 = vand.u32 %v1041, 4294901760
    %1572 = vmatpush1.msra.mxu0 %v1571
    %1573 = vmatprep.subr.mxu0 0.0
    %v1574 = vand.u32 %v1042, 4294901760
    %1575 = vmatpush1.msra.mxu0 %v1574
    %1576 = vmatprep.subr.mxu0 0.0
    %v1577 = vand.u32 %v1043, 4294901760
    %1578 = vmatpush1.msra.mxu0 %v1577
    %1579 = vmatprep.subr.mxu0 0.0
    %v1580 = vand.u32 %v1044, 4294901760
    %1581 = vmatpush1.msra.mxu0 %v1580
    %1582 = vmatprep.subr.mxu0 0.0
    %v1583 = vand.u32 %v1045, 4294901760
    %1584 = vmatpush1.msra.mxu0 %v1583
    %1585 = vmatprep.subr.mxu0 0.0
    %v1586 = vand.u32 %v1046, 4294901760
    %1587 = vmatpush1.msra.mxu0 %v1586
    %1588 = vmatprep.subr.mxu0 0.0
    %v1589 = vand.u32 %v1047, 4294901760
    %1590 = vmatpush1.msra.mxu0 %v1589
    %1591 = vmatprep.subr.mxu0 0.0
    %v1592 = vand.u32 %v1048, 4294901760
    %1593 = vmatpush1.msra.mxu0 %v1592
    %1594 = vmatprep.subr.mxu0 0.0
    %v1595 = vand.u32 %v1049, 4294901760
    %1596 = vmatpush1.msra.mxu0 %v1595
    %1597 = vmatprep.subr.mxu0 0.0
    %v1598 = vand.u32 %v1050, 4294901760
    %1599 = vmatpush1.msra.mxu0 %v1598
    %1600 = vmatprep.subr.mxu0 0.0
    %v1601 = vand.u32 %v1051, 4294901760
    %1602 = vmatpush1.msra.mxu0 %v1601
    %1603 = vmatprep.subr.mxu0 0.0
    %v1604 = vand.u32 %v1052, 4294901760
    %1605 = vmatpush1.msra.mxu0 %v1604
    %1606 = vmatprep.subr.mxu0 0.0
    %v1607 = vand.u32 %v1053, 4294901760
    %1608 = vmatpush1.msra.mxu0 %v1607
    %1609 = vmatprep.subr.mxu0 0.0
    %1610 = vmatpush1.msra.mxu0 0.0
    %1611 = vmatprep.subr.mxu0 0.0
    %1612 = vmatpush1.msra.mxu0 0.0
    %1613 = vmatprep.subr.mxu0 0.0
    %1614 = vmatpush1.msra.mxu0 0.0
    %1615 = vmatprep.subr.mxu0 0.0
    %1616 = vmatpush1.msra.mxu0 0.0
    %1617 = vmatprep.subr.mxu0 0.0
    %1618 = vmatpush1.msra.mxu0 0.0
    %1619 = vmatprep.subr.mxu0 0.0
    %1620 = vmatpush1.msra.mxu0 0.0
    %1621 = vmatprep.subr.mxu0 0.0
    %1622 = vmatpush1.msra.mxu0 0.0
    %1623 = vmatprep.subr.mxu0 0.0
    %1624 = vmatpush1.msra.mxu0 0.0
    %1625 = vmatprep.subr.mxu0 0.0
    %1626 = vmatpush1.msra.mxu0 0.0
    %1627 = vmatprep.subr.mxu0 0.0
    %1628 = vmatpush1.msra.mxu0 0.0
    %1629 = vmatprep.subr.mxu0 0.0
    %1630 = vmatpush1.msra.mxu0 0.0
    %1631 = vmatprep.subr.mxu0 0.0
    %1632 = vmatpush1.msra.mxu0 0.0
    %1633 = vmatprep.subr.mxu0 0.0
    %1634 = vmatpush1.msra.mxu0 0.0
    %1635 = vmatprep.subr.mxu0 0.0
    %1636 = vmatpush1.msra.mxu0 0.0
    %1637 = vmatprep.subr.mxu0 0.0
    %1638 = vmatpush1.msra.mxu0 0.0
    %1639 = vmatprep.subr.mxu0 0.0
    %1640 = vmatpush1.msra.mxu0 0.0
    %1641 = vmatprep.mubr.f32.mxu0 0.0
    %v1642 = vand.u32 %v309, 4294901760
    %v1643 = vsub.f32 %v309, %v1642
    %v1644 = vand.u32 %v1643, 4294901760
    %1645 = vmatmul.mubr.f32.gmra.mrb[0].mxu0 %v1644
    %v1646 = vpop.f32.mrb[0].mxu0
    %v1647 = vadd.f32 %v1509, %v1646
    %v1648 = vpop.f32.mrb[0].mxu0
    %1649 = vmatprep.mubr.f32.mxu0 0.0
    %v1650 = vand.u32 %v413, 4294901760
    %v1651 = vsub.f32 %v413, %v1650
    %v1652 = vand.u32 %v1651, 4294901760
    %1653 = vmatmul.mubr.f32.gmra.mrb[0].mxu0 %v1652
    %v1654 = vpop.f32.mrb[0].mxu0
    %v1655 = vadd.f32 %v1516, %v1654
    %v1656 = vpop.f32.mrb[0].mxu0
    %1657 = vmatprep.mubr.f32.mxu0 0.0
    %v1658 = vand.u32 %v517, 4294901760
    %v1659 = vsub.f32 %v517, %v1658
    %v1660 = vand.u32 %v1659, 4294901760
    %1661 = vmatmul.mubr.f32.gmra.mrb[0].mxu0 %v1660
    %v1662 = vpop.f32.mrb[0].mxu0
    %v1663 = vadd.f32 %v1523, %v1662
    %v1664 = vpop.f32.mrb[0].mxu0
    %1665 = vmatprep.mubr.f32.mxu0 0.0
    %v1666 = vand.u32 %v621, 4294901760
    %v1667 = vsub.f32 %v621, %v1666
    %v1668 = vand.u32 %v1667, 4294901760
    %1669 = vmatmul.mubr.f32.gmra.mrb[0].mxu0 %v1668
    %v1670 = vpop.f32.mrb[0].mxu0
    %v1671 = vadd.f32 %v1530, %v1670
    %v1672 = vpop.f32.mrb[0].mxu0
    %1673 = vmatprep.mubr.f32.mxu0 0.0
    %v1674 = vand.u32 %v725, 4294901760
    %v1675 = vsub.f32 %v725, %v1674
    %v1676 = vand.u32 %v1675, 4294901760
    %1677 = vmatmul.mubr.f32.gmra.mrb[0].mxu0 %v1676
    %v1678 = vpop.f32.mrb[0].mxu0
    %v1679 = vadd.f32 %v1537, %v1678
    %v1680 = vpop.f32.mrb[0].mxu0
    %1681 = vmatprep.mubr.f32.mxu0 0.0
    %v1682 = vand.u32 %v829, 4294901760
    %v1683 = vsub.f32 %v829, %v1682
    %v1684 = vand.u32 %v1683, 4294901760
    %1685 = vmatmul.mubr.f32.gmra.mrb[0].mxu0 %v1684
    %v1686 = vpop.f32.mrb[0].mxu0
    %v1687 = vadd.f32 %v1544, %v1686
    %v1688 = vpop.f32.mrb[0].mxu0
    %1689 = vmatprep.mubr.f32.mxu0 0.0
    %v1690 = vand.u32 %v933, 4294901760
    %v1691 = vsub.f32 %v933, %v1690
    %v1692 = vand.u32 %v1691, 4294901760
    %1693 = vmatmul.mubr.f32.gmra.mrb[0].mxu0 %v1692
    %v1694 = vpop.f32.mrb[0].mxu0
    %v1695 = vadd.f32 %v1551, %v1694
    %v1696 = vpop.f32.mrb[0].mxu0
    %1697 = vmatprep.mubr.f32.mxu0 0.0
    %v1698 = vand.u32 %v1037, 4294901760
    %v1699 = vsub.f32 %v1037, %v1698
    %v1700 = vand.u32 %v1699, 4294901760
    %1701 = vmatmul.mubr.f32.gmra.mrb[0].mxu0 %v1700
    %v1702 = vpop.f32.mrb[0].mxu0
    %v1703 = vadd.f32 %v1558, %v1702
    %v1704 = vpop.f32.mrb[0].mxu0
    %1705 = vdwg.mxu0
    %1706 = vmatprep.subr.mxu0 0.0
    %v1707 = vand.u32 %v1038, 4294901760
    %v1708 = vsub.f32 %v1038, %v1707
    %v1709 = vand.u32 %v1708, 4294901760
    %1710 = vmatpush1.msra.mxu0 %v1709
    %1711 = vmatprep.subr.mxu0 0.0
    %v1712 = vand.u32 %v1039, 4294901760
    %v1713 = vsub.f32 %v1039, %v1712
    %v1714 = vand.u32 %v1713, 4294901760
    %1715 = vmatpush1.msra.mxu0 %v1714
    %1716 = vmatprep.subr.mxu0 0.0
    %v1717 = vand.u32 %v1040, 4294901760
    %v1718 = vsub.f32 %v1040, %v1717
    %v1719 = vand.u32 %v1718, 4294901760
    %1720 = vmatpush1.msra.mxu0 %v1719
    %1721 = vmatprep.subr.mxu0 0.0
    %v1722 = vand.u32 %v1041, 4294901760
    %v1723 = vsub.f32 %v1041, %v1722
    %v1724 = vand.u32 %v1723, 4294901760
    %1725 = vmatpush1.msra.mxu0 %v1724
    %1726 = vmatprep.subr.mxu0 0.0
    %v1727 = vand.u32 %v1042, 4294901760
    %v1728 = vsub.f32 %v1042, %v1727
    %v1729 = vand.u32 %v1728, 4294901760
    %1730 = vmatpush1.msra.mxu0 %v1729
    %1731 = vmatprep.subr.mxu0 0.0
    %v1732 = vand.u32 %v1043, 4294901760
    %v1733 = vsub.f32 %v1043, %v1732
    %v1734 = vand.u32 %v1733, 4294901760
    %1735 = vmatpush1.msra.mxu0 %v1734
    %1736 = vmatprep.subr.mxu0 0.0
    %v1737 = vand.u32 %v1044, 4294901760
    %v1738 = vsub.f32 %v1044, %v1737
    %v1739 = vand.u32 %v1738, 4294901760
    %1740 = vmatpush1.msra.mxu0 %v1739
    %1741 = vmatprep.subr.mxu0 0.0
    %v1742 = vand.u32 %v1045, 4294901760
    %v1743 = vsub.f32 %v1045, %v1742
    %v1744 = vand.u32 %v1743, 4294901760
    %1745 = vmatpush1.msra.mxu0 %v1744
    %1746 = vmatprep.subr.mxu0 0.0
    %v1747 = vand.u32 %v1046, 4294901760
    %v1748 = vsub.f32 %v1046, %v1747
    %v1749 = vand.u32 %v1748, 4294901760
    %1750 = vmatpush1.msra.mxu0 %v1749
    %1751 = vmatprep.subr.mxu0 0.0
    %v1752 = vand.u32 %v1047, 4294901760
    %v1753 = vsub.f32 %v1047, %v1752
    %v1754 = vand.u32 %v1753, 4294901760
    %1755 = vmatpush1.msra.mxu0 %v1754
    %1756 = vmatprep.subr.mxu0 0.0
    %v1757 = vand.u32 %v1048, 4294901760
    %v1758 = vsub.f32 %v1048, %v1757
    %v1759 = vand.u32 %v1758, 4294901760
    %1760 = vmatpush1.msra.mxu0 %v1759
    %1761 = vmatprep.subr.mxu0 0.0
    %v1762 = vand.u32 %v1049, 4294901760
    %v1763 = vsub.f32 %v1049, %v1762
    %v1764 = vand.u32 %v1763, 4294901760
    %1765 = vmatpush1.msra.mxu0 %v1764
    %1766 = vmatprep.subr.mxu0 0.0
    %v1767 = vand.u32 %v1050, 4294901760
    %v1768 = vsub.f32 %v1050, %v1767
    %v1769 = vand.u32 %v1768, 4294901760
    %1770 = vmatpush1.msra.mxu0 %v1769
    %1771 = vmatprep.subr.mxu0 0.0
    %v1772 = vand.u32 %v1051, 4294901760
    %v1773 = vsub.f32 %v1051, %v1772
    %v1774 = vand.u32 %v1773, 4294901760
    %1775 = vmatpush1.msra.mxu0 %v1774
    %1776 = vmatprep.subr.mxu0 0.0
    %v1777 = vand.u32 %v1052, 4294901760
    %v1778 = vsub.f32 %v1052, %v1777
    %v1779 = vand.u32 %v1778, 4294901760
    %1780 = vmatpush1.msra.mxu0 %v1779
    %1781 = vmatprep.subr.mxu0 0.0
    %v1782 = vand.u32 %v1053, 4294901760
    %v1783 = vsub.f32 %v1053, %v1782
    %v1784 = vand.u32 %v1783, 4294901760
    %1785 = vmatpush1.msra.mxu0 %v1784
    %1786 = vmatprep.subr.mxu0 0.0
    %1787 = vmatpush1.msra.mxu0 0.0
    %1788 = vmatprep.subr.mxu0 0.0
    %1789 = vmatpush1.msra.mxu0 0.0
    %1790 = vmatprep.subr.mxu0 0.0
    %1791 = vmatpush1.msra.mxu0 0.0
    %1792 = vmatprep.subr.mxu0 0.0
    %1793 = vmatpush1.msra.mxu0 0.0
    %1794 = vmatprep.subr.mxu0 0.0
    %1795 = vmatpush1.msra.mxu0 0.0
    %1796 = vmatprep.subr.mxu0 0.0
    %1797 = vmatpush1.msra.mxu0 0.0
    %1798 = vmatprep.subr.mxu0 0.0
    %1799 = vmatpush1.msra.mxu0 0.0
    %1800 = vmatprep.subr.mxu0 0.0
    %1801 = vmatpush1.msra.mxu0 0.0
    %1802 = vmatprep.subr.mxu0 0.0
    %1803 = vmatpush1.msra.mxu0 0.0
    %1804 = vmatprep.subr.mxu0 0.0
    %1805 = vmatpush1.msra.mxu0 0.0
    %1806 = vmatprep.subr.mxu0 0.0
    %1807 = vmatpush1.msra.mxu0 0.0
    %1808 = vmatprep.subr.mxu0 0.0
    %1809 = vmatpush1.msra.mxu0 0.0
    %1810 = vmatprep.subr.mxu0 0.0
    %1811 = vmatpush1.msra.mxu0 0.0
    %1812 = vmatprep.subr.mxu0 0.0
    %1813 = vmatpush1.msra.mxu0 0.0
    %1814 = vmatprep.subr.mxu0 0.0
    %1815 = vmatpush1.msra.mxu0 0.0
    %1816 = vmatprep.subr.mxu0 0.0
    %1817 = vmatpush1.msra.mxu0 0.0
    %1818 = vmatprep.mubr.f32.mxu0 0.0
    %v1819 = vand.u32 %v309, 4294901760
    %1820 = vmatmul.mubr.f32.gmra.mrb[0].mxu0 %v1819
    %v1821 = vpop.f32.mrb[0].mxu0
    %v1822 = vadd.f32 %v1647, %v1821
    %v1823 = vpop.f32.mrb[0].mxu0
    %1824 = vmatprep.mubr.f32.mxu0 0.0
    %v1825 = vand.u32 %v413, 4294901760
    %1826 = vmatmul.mubr.f32.gmra.mrb[0].mxu0 %v1825
    %v1827 = vpop.f32.mrb[0].mxu0
    %v1828 = vadd.f32 %v1655, %v1827
    %v1829 = vpop.f32.mrb[0].mxu0
    %1830 = vmatprep.mubr.f32.mxu0 0.0
    %v1831 = vand.u32 %v517, 4294901760
    %1832 = vmatmul.mubr.f32.gmra.mrb[0].mxu0 %v1831
    %v1833 = vpop.f32.mrb[0].mxu0
    %v1834 = vadd.f32 %v1663, %v1833
    %v1835 = vpop.f32.mrb[0].mxu0
    %1836 = vmatprep.mubr.f32.mxu0 0.0
    %v1837 = vand.u32 %v621, 4294901760
    %1838 = vmatmul.mubr.f32.gmra.mrb[0].mxu0 %v1837
    %v1839 = vpop.f32.mrb[0].mxu0
    %v1840 = vadd.f32 %v1671, %v1839
    %v1841 = vpop.f32.mrb[0].mxu0
    %1842 = vmatprep.mubr.f32.mxu0 0.0
    %v1843 = vand.u32 %v725, 4294901760
    %1844 = vmatmul.mubr.f32.gmra.mrb[0].mxu0 %v1843
    %v1845 = vpop.f32.mrb[0].mxu0
    %v1846 = vadd.f32 %v1679, %v1845
    %v1847 = vpop.f32.mrb[0].mxu0
    %1848 = vmatprep.mubr.f32.mxu0 0.0
    %v1849 = vand.u32 %v829, 4294901760
    %1850 = vmatmul.mubr.f32.gmra.mrb[0].mxu0 %v1849
    %v1851 = vpop.f32.mrb[0].mxu0
    %v1852 = vadd.f32 %v1687, %v1851
    %v1853 = vpop.f32.mrb[0].mxu0
    %1854 = vmatprep.mubr.f32.mxu0 0.0
    %v1855 = vand.u32 %v933, 4294901760
    %1856 = vmatmul.mubr.f32.gmra.mrb[0].mxu0 %v1855
    %v1857 = vpop.f32.mrb[0].mxu0
    %v1858 = vadd.f32 %v1695, %v1857
    %v1859 = vpop.f32.mrb[0].mxu0
    %1860 = vmatprep.mubr.f32.mxu0 0.0
    %v1861 = vand.u32 %v1037, 4294901760
    %1862 = vmatmul.mubr.f32.gmra.mrb[0].mxu0 %v1861
    %v1863 = vpop.f32.mrb[0].mxu0
    %v1864 = vadd.f32 %v1703, %v1863
    %v1865 = vpop.f32.mrb[0].mxu0
    %1866 = vdwg.mxu0
    %1867 = vmatprep.subr.mxu0 0.0
    %v1868 = vand.u32 %v1038, 4294901760
    %1869 = vmatpush1.msra.mxu0 %v1868
    %1870 = vmatprep.subr.mxu0 0.0
    %v1871 = vand.u32 %v1039, 4294901760
    %1872 = vmatpush1.msra.mxu0 %v1871
    %1873 = vmatprep.subr.mxu0 0.0
    %v1874 = vand.u32 %v1040, 4294901760
    %1875 = vmatpush1.msra.mxu0 %v1874
    %1876 = vmatprep.subr.mxu0 0.0
    %v1877 = vand.u32 %v1041, 4294901760
    %1878 = vmatpush1.msra.mxu0 %v1877
    %1879 = vmatprep.subr.mxu0 0.0
    %v1880 = vand.u32 %v1042, 4294901760
    %1881 = vmatpush1.msra.mxu0 %v1880
    %1882 = vmatprep.subr.mxu0 0.0
    %v1883 = vand.u32 %v1043, 4294901760
    %1884 = vmatpush1.msra.mxu0 %v1883
    %1885 = vmatprep.subr.mxu0 0.0
    %v1886 = vand.u32 %v1044, 4294901760
    %1887 = vmatpush1.msra.mxu0 %v1886
    %1888 = vmatprep.subr.mxu0 0.0
    %v1889 = vand.u32 %v1045, 4294901760
    %1890 = vmatpush1.msra.mxu0 %v1889
    %1891 = vmatprep.subr.mxu0 0.0
    %v1892 = vand.u32 %v1046, 4294901760
    %1893 = vmatpush1.msra.mxu0 %v1892
    %1894 = vmatprep.subr.mxu0 0.0
    %v1895 = vand.u32 %v1047, 4294901760
    %1896 = vmatpush1.msra.mxu0 %v1895
    %1897 = vmatprep.subr.mxu0 0.0
    %v1898 = vand.u32 %v1048, 4294901760
    %1899 = vmatpush1.msra.mxu0 %v1898
    %1900 = vmatprep.subr.mxu0 0.0
    %v1901 = vand.u32 %v1049, 4294901760
    %1902 = vmatpush1.msra.mxu0 %v1901
    %1903 = vmatprep.subr.mxu0 0.0
    %v1904 = vand.u32 %v1050, 4294901760
    %1905 = vmatpush1.msra.mxu0 %v1904
    %1906 = vmatprep.subr.mxu0 0.0
    %v1907 = vand.u32 %v1051, 4294901760
    %1908 = vmatpush1.msra.mxu0 %v1907
    %1909 = vmatprep.subr.mxu0 0.0
    %v1910 = vand.u32 %v1052, 4294901760
    %1911 = vmatpush1.msra.mxu0 %v1910
    %1912 = vmatprep.subr.mxu0 0.0
    %v1913 = vand.u32 %v1053, 4294901760
    %1914 = vmatpush1.msra.mxu0 %v1913
    %1915 = vmatprep.subr.mxu0 0.0
    %1916 = vmatpush1.msra.mxu0 0.0
    %1917 = vmatprep.subr.mxu0 0.0
    %1918 = vmatpush1.msra.mxu0 0.0
    %1919 = vmatprep.subr.mxu0 0.0
    %1920 = vmatpush1.msra.mxu0 0.0
    %1921 = vmatprep.subr.mxu0 0.0
    %1922 = vmatpush1.msra.mxu0 0.0
    %1923 = vmatprep.subr.mxu0 0.0
    %1924 = vmatpush1.msra.mxu0 0.0
    %1925 = vmatprep.subr.mxu0 0.0
    %1926 = vmatpush1.msra.mxu0 0.0
    %1927 = vmatprep.subr.mxu0 0.0
    %1928 = vmatpush1.msra.mxu0 0.0
    %1929 = vmatprep.subr.mxu0 0.0
    %1930 = vmatpush1.msra.mxu0 0.0
    %1931 = vmatprep.subr.mxu0 0.0
    %1932 = vmatpush1.msra.mxu0 0.0
    %1933 = vmatprep.subr.mxu0 0.0
    %1934 = vmatpush1.msra.mxu0 0.0
    %1935 = vmatprep.subr.mxu0 0.0
    %1936 = vmatpush1.msra.mxu0 0.0
    %1937 = vmatprep.subr.mxu0 0.0
    %1938 = vmatpush1.msra.mxu0 0.0
    %1939 = vmatprep.subr.mxu0 0.0
    %1940 = vmatpush1.msra.mxu0 0.0
    %1941 = vmatprep.subr.mxu0 0.0
    %1942 = vmatpush1.msra.mxu0 0.0
    %1943 = vmatprep.subr.mxu0 0.0
    %1944 = vmatpush1.msra.mxu0 0.0
    %1945 = vmatprep.subr.mxu0 0.0
    %1946 = vmatpush1.msra.mxu0 0.0
    %1947 = vmatprep.mubr.f32.mxu0 0.0
    %v1948 = vand.u32 %v309, 4294901760
    %1949 = vmatmul.mubr.f32.gmra.mrb[0].mxu0 %v1948
    %v1950 = vpop.f32.mrb[0].mxu0
    %v1951 = vadd.f32 %v1822, %v1950
    %v1952 = vpop.f32.mrb[0].mxu0
    %1953 = vmatprep.mubr.f32.mxu0 0.0
    %v1954 = vand.u32 %v413, 4294901760
    %1955 = vmatmul.mubr.f32.gmra.mrb[0].mxu0 %v1954
    %v1956 = vpop.f32.mrb[0].mxu0
    %v1957 = vadd.f32 %v1828, %v1956
    %v1958 = vpop.f32.mrb[0].mxu0
    %1959 = vmatprep.mubr.f32.mxu0 0.0
    %v1960 = vand.u32 %v517, 4294901760
    %1961 = vmatmul.mubr.f32.gmra.mrb[0].mxu0 %v1960
    %v1962 = vpop.f32.mrb[0].mxu0
    %v1963 = vadd.f32 %v1834, %v1962
    %v1964 = vpop.f32.mrb[0].mxu0
    %1965 = vmatprep.mubr.f32.mxu0 0.0
    %v1966 = vand.u32 %v621, 4294901760
    %1967 = vmatmul.mubr.f32.gmra.mrb[0].mxu0 %v1966
    %v1968 = vpop.f32.mrb[0].mxu0
    %v1969 = vadd.f32 %v1840, %v1968
    %v1970 = vpop.f32.mrb[0].mxu0
    %1971 = vmatprep.mubr.f32.mxu0 0.0
    %v1972 = vand.u32 %v725, 4294901760
    %1973 = vmatmul.mubr.f32.gmra.mrb[0].mxu0 %v1972
    %v1974 = vpop.f32.mrb[0].mxu0
    %v1975 = vadd.f32 %v1846, %v1974
    %v1976 = vpop.f32.mrb[0].mxu0
    %1977 = vmatprep.mubr.f32.mxu0 0.0
    %v1978 = vand.u32 %v829, 4294901760
    %1979 = vmatmul.mubr.f32.gmra.mrb[0].mxu0 %v1978
    %v1980 = vpop.f32.mrb[0].mxu0
    %v1981 = vadd.f32 %v1852, %v1980
    %v1982 = vpop.f32.mrb[0].mxu0
    %1983 = vmatprep.mubr.f32.mxu0 0.0
    %v1984 = vand.u32 %v933, 4294901760
    %1985 = vmatmul.mubr.f32.gmra.mrb[0].mxu0 %v1984
    %v1986 = vpop.f32.mrb[0].mxu0
    %v1987 = vadd.f32 %v1858, %v1986
    %v1988 = vpop.f32.mrb[0].mxu0
    %1989 = vmatprep.mubr.f32.mxu0 0.0
    %v1990 = vand.u32 %v1037, 4294901760
    %1991 = vmatmul.mubr.f32.gmra.mrb[0].mxu0 %v1990
    %v1992 = vpop.f32.mrb[0].mxu0
    %v1993 = vadd.f32 %v1864, %v1992
    %v1994 = vpop.f32.mrb[0].mxu0
    %1995 = vdwg.mxu0
    %1996 = vst [vmem:[#allocation5] sm:$0xff] %v1951
    %1997 = vst [vmem:[#allocation5 + $0x8] sm:$0xff] %v1957
    %1998 = vst [vmem:[#allocation5 + $0x10] sm:$0xff] %v1963
    %1999 = vst [vmem:[#allocation5 + $0x18] sm:$0xff] %v1969
    %2000 = vst [vmem:[#allocation5 + $0x20] sm:$0xff] %v1975
    %2001 = vst [vmem:[#allocation5 + $0x28] sm:$0xff] %v1981
    %2002 = vst [vmem:[#allocation5 + $0x30] sm:$0xff] %v1987
    %2003 = vst [vmem:[#allocation5 + $0x38] sm:$0xff] %v1993
    // Predicated region
    $region18: #{tpu_custom_call.1} parent=1 // pred_check
      _
    $region19: #{tpu_custom_call.1} parent=1 // pred_check_branch
      %2005 = sbr.rel (0) target = $region21
    $region20: #{tpu_custom_call.1} parent=1 // pred_region
      %s2007 = ssub.s32 1024, 1024
      %2008 = vsyncadd [#allocation4], %s2007
      %s2009 = sshll.u32 [#allocation5], 4
      %s2010 = int_to_ptr.vmem [resolvable:$true] %s2009
      %2015 = dma.vmem_to_hbm [thread:$0]  %s2010, 1024, %s3, [#allocation4], 128, 128, 8
    $region21: #{tpu_custom_call.1} parent=1 // pred_fallthru
      _
    // Predicated region
    $region22: #{tpu_custom_call.1} parent=1 // pred_check
      _
    $region23: #{tpu_custom_call.1} parent=1 // pred_check_branch
      %2017 = sbr.rel (0) target = $region25
    $region24: #{tpu_custom_call.1} parent=1 // pred_region
      %2018 = dma.done [#allocation4], 1024
    $region25: #{tpu_custom_call.1} parent=1 // pred_fallthru
      _
    %2019 = vsyncpa [#allocation3], 1
    %2020 = vsyncpa [#allocation4], 1

</llo_original>
